<compile_context>
chip_gen: v5e
topology: v5e:2x2
jax: 0.10.0
libtpu: 0.0.40
codegen_flags: <defaults>
</compile_context>

<pallas_src>
import functools

import jax
import jax.numpy as jnp
import numpy as np
from jax import lax
from jax.experimental import pallas as pl
from jax.experimental.pallas import tpu as pltpu

XVECTOR_TDNNS_LENGTH_REDUCTION = 14


# --------------------------- helpers -----------------------------------------

def _rup(n, m):
    return ((n + m - 1) // m) * m


def _pad_right(a, shape):
    return jnp.pad(a, [(0, s - d) for d, s in zip(a.shape, shape)])


# --------------------------- Pallas kernels ----------------------------------

def _backbone_pool_kernel(len_ref, x_ref, wp_ref, bp_ref,
                          w1_ref, b1_ref, w2_ref, b2_ref, w3_ref, b3_ref,
                          w4_ref, b4_ref, w5_ref, b5_ref,
                          mean_ref, std_ref, *, tdnn_cfg):
    """Fused projector + 5-layer TDNN stack + masked statistics pooling.

    One grid step per utterance ("parallel" -> shardable across TensorCores).
    All matmuls: bf16 operands, f32 accumulation on the MXU.  The big
    (T, aggregation) activation stays in VMEM and never touches HBM.
    """
    bidx = pl.program_id(0)
    bf16, f32 = jnp.bfloat16, jnp.float32

    # ---- projector (nn.Linear, no activation) ------------------------------
    x = x_ref[0]                                                 # (Tp, Dp) bf16
    h = jnp.dot(x, wp_ref[...], preferred_element_type=f32) + bp_ref[...]

    # ---- TDNN stack: unfold + Linear + ReLU == sum of time-shifted matmuls --
    # (batch_norm=False, dropout_p=0.0 -> only Linear + ReLU per layer)
    w_refs = (w1_ref, w2_ref, w3_ref, w4_ref, w5_ref)
    b_refs = (b1_ref, b2_ref, b3_ref, b4_ref, b5_ref)
    for li, (ctx, dil) in enumerate(tdnn_cfg):
        t_out = h.shape[0] - dil * (ctx - 1)
        acc = jnp.dot(h[0:t_out, :].astype(bf16), w_refs[li][0],
                      preferred_element_type=f32)
        for c in range(1, ctx):                      # static taps (<= 5)
            s = c * dil
            acc = acc + jnp.dot(h[s:s + t_out, :].astype(bf16), w_refs[li][c],
                                preferred_element_type=f32)
        h = jnp.maximum(acc + b_refs[li][...], 0.0)              # ReLU, f32

    # ---- one-pass masked temporal statistics pooling (mean + unbiased std) --
    n = len_ref[bidx] - XVECTOR_TDNNS_LENGTH_REDUCTION
    n_f = n.astype(f32)
    row = lax.broadcasted_iota(jnp.int32, h.shape, 0)
    mask = (row < n).astype(f32)
    hm = h * mask
    s1 = jnp.sum(hm, axis=0, keepdims=True)                      # (1, Ap)
    s2 = jnp.sum(hm * h, axis=0, keepdims=True)                  # (1, Ap)
    mean = s1 / n_f
    # guard (n - 1) against zero (PyTorch would emit inf/nan for n == 1)
    var = (s2 - mean * s1) / jnp.maximum(n_f - 1.0, 1.0)
    std = jnp.sqrt(jnp.maximum(var, 0.0))
    mean_ref[0] = mean
    std_ref[0] = std


def _affine_kernel(mean_ref, std_ref, w1m_ref, w1s_ref, b1_ref,
                   w2_ref, b2_ref, o_ref):
    """Fused _UtteranceExtractor: Linear+ReLU, Linear+ReLU on pooled stats.

    affine1's weight is pre-split into its mean / std halves, so the
    mean||std concatenation is folded into two matmuls (no lane concat).
    Both linear layers are applied (nn.Module default training=True).
    """
    bf16, f32 = jnp.bfloat16, jnp.float32
    hid = jnp.dot(mean_ref[...].astype(bf16), w1m_ref[...],
                  preferred_element_type=f32)
    hid = hid + jnp.dot(std_ref[...].astype(bf16), w1s_ref[...],
                        preferred_element_type=f32)
    hid = jnp.maximum(hid + b1_ref[...], 0.0).astype(bf16)
    out = jnp.dot(hid, w2_ref[...], preferred_element_type=f32)
    o_ref[...] = jnp.maximum(out + b2_ref[...], 0.0)


# --------------------------- parameters --------------------------------------

def init_linear(key, fan_in, fan_out):
    """PyTorch-style uniform(-1/sqrt(fan_in), 1/sqrt(fan_in)) init."""
    kw, kb = jax.random.split(key)
    bound = 1.0 / float(np.sqrt(fan_in))
    w = jax.random.uniform(kw, (fan_in, fan_out), jnp.float32, -bound, bound)
    b = jax.random.uniform(kb, (fan_out,), jnp.float32, -bound, bound)
    return w, b


def init_params(key, input_size, output_size=512, hidden_size=512,
                aggregation_size=1500):
    """Unpadded (logical) f32 parameters, mirroring the PyTorch module."""
    keys = jax.random.split(key, 8)
    params = {"projector": init_linear(keys[0], input_size, hidden_size)}

    # XVectorBackbone TDNN stack: (in, out, context, dilation).
    # With the default config hidden_size == 512, matching the module exactly.
    tdnn_cfg = [
        (hidden_size, hidden_size, 5, 1),
        (hidden_size, hidden_size, 3, 2),
        (hidden_size, hidden_size, 3, 3),
        (hidden_size, hidden_size, 1, 1),
        (hidden_size, aggregation_size, 1, 1),
    ]
    tdnns = []
    for i, (cin, cout, ctx, dil) in enumerate(tdnn_cfg):
        w2d, b = init_linear(keys[1 + i], cin * ctx, cout)
        # nn.Linear weight over the unfold output, laid out (ctx, cin, cout)
        tdnns.append((w2d.reshape(ctx, cin, cout), b, ctx, dil))
    params["tdnns"] = tdnns

    params["affine1"] = init_linear(keys[6], 2 * aggregation_size, output_size)
    params["affine2"] = init_linear(keys[7], output_size, output_size)
    return params


def pack_params(params):
    """Pad every channel dim to a multiple of 128 lanes; weights -> bf16."""
    wp, bp = params["projector"]
    D, H = wp.shape
    tdnns = params["tdnns"]
    agg = tdnns[-1][0].shape[2]
    w1a, b1a = params["affine1"]
    w2a, b2a = params["affine2"]
    out_size = w2a.shape[1]

    Dp, Hp, Ap, Op = _rup(D, 128), _rup(H, 128), _rup(agg, 128), _rup(out_size, 128)

    pk = {
        "dims": {"D": D, "H": H, "agg": agg, "out": out_size,
                 "Dp": Dp, "Hp": Hp, "Ap": Ap, "Op": Op},
        "tdnn_cfg": tuple((ctx, dil) for (_, _, ctx, dil) in tdnns),
    }

    pk["wp"] = _pad_right(wp, (Dp, Hp)).astype(jnp.bfloat16)
    pk["bp"] = _pad_right(bp[None, :], (1, Hp))                   # f32

    for i, (wt, bt, ctx, dil) in enumerate(tdnns):
        assert wt.shape[1] == H
        cout_p = Ap if i == len(tdnns) - 1 else Hp
        pk[f"w{i + 1}"] = _pad_right(wt, (ctx, Hp, cout_p)).astype(jnp.bfloat16)
        pk[f"b{i + 1}"] = _pad_right(bt[None, :], (1, cout_p))    # f32

    # split affine1 into its mean / std halves (folds the pooled concat)
    pk["w1m"] = _pad_right(w1a[:agg], (Ap, Op)).astype(jnp.bfloat16)
    pk["w1s"] = _pad_right(w1a[agg:], (Ap, Op)).astype(jnp.bfloat16)
    pk["b1a"] = _pad_right(b1a[None, :], (1, Op))
    pk["w2a"] = _pad_right(w2a, (Op, Op)).astype(jnp.bfloat16)
    pk["b2a"] = _pad_right(b2a[None, :], (1, Op))
    return pk


# --------------------------- forward ------------------------------------------

def superb_xvector_forward(pk, x, x_len):
    dims = pk["dims"]
    B, T, D = x.shape
    assert D == dims["D"]
    Dp, Hp, Ap, Op = dims["Dp"], dims["Hp"], dims["Ap"], dims["Op"]
    Tp = _rup(T, 8)

    xp = _pad_right(x, (B, Tp, Dp)).astype(jnp.bfloat16)
    lens = x_len.astype(jnp.int32)
    tdnn_cfg = pk["tdnn_cfg"]
    n_taps = sum(ctx for ctx, _ in tdnn_cfg[:-1])                 # Hp x Hp taps

    ce_bb = pl.CostEstimate(
        flops=2 * B * Tp * (Dp * Hp + n_taps * Hp * Hp + Hp * Ap),
        transcendentals=B * Ap,
        bytes_accessed=int(B * Tp * Dp * 2 + 2 * B * Ap * 4
                           + (Dp * Hp + n_taps * Hp * Hp + Hp * Ap) * 2
                           + (5 * Hp + Ap) * 4),
    )

    # ---- kernel 1: projector + TDNN stack + statistics pooling -------------
    # Constant index_maps keep the weights resident in VMEM across the whole
    # batch grid; only the per-utterance (1, Tp, Dp) input block is streamed.
    mean, std = pl.pallas_call(
        functools.partial(_backbone_pool_kernel, tdnn_cfg=tdnn_cfg),
        out_shape=(jax.ShapeDtypeStruct((B, 1, Ap), jnp.float32),
                   jax.ShapeDtypeStruct((B, 1, Ap), jnp.float32)),
        grid_spec=pltpu.PrefetchScalarGridSpec(
            num_scalar_prefetch=1,
            grid=(B,),
            in_specs=[
                pl.BlockSpec((1, Tp, Dp), lambda b, lens: (b, 0, 0)),
                pl.BlockSpec(pk["wp"].shape, lambda b, lens: (0, 0)),
                pl.BlockSpec(pk["bp"].shape, lambda b, lens: (0, 0)),
                pl.BlockSpec(pk["w1"].shape, lambda b, lens: (0, 0, 0)),
                pl.BlockSpec(pk["b1"].shape, lambda b, lens: (0, 0)),
                pl.BlockSpec(pk["w2"].shape, lambda b, lens: (0, 0, 0)),
                pl.BlockSpec(pk["b2"].shape, lambda b, lens: (0, 0)),
                pl.BlockSpec(pk["w3"].shape, lambda b, lens: (0, 0, 0)),
                pl.BlockSpec(pk["b3"].shape, lambda b, lens: (0, 0)),
                pl.BlockSpec(pk["w4"].shape, lambda b, lens: (0, 0, 0)),
                pl.BlockSpec(pk["b4"].shape, lambda b, lens: (0, 0)),
                pl.BlockSpec(pk["w5"].shape, lambda b, lens: (0, 0, 0)),
                pl.BlockSpec(pk["b5"].shape, lambda b, lens: (0, 0)),
            ],
            out_specs=[pl.BlockSpec((1, 1, Ap), lambda b, lens: (b, 0, 0)),
                       pl.BlockSpec((1, 1, Ap), lambda b, lens: (b, 0, 0))],
        ),
        compiler_params=pltpu.CompilerParams(
            dimension_semantics=("parallel",),
            vmem_limit_bytes=64 * 1024 * 1024),
        cost_estimate=ce_bb,
    )(lens, xp, pk["wp"], pk["bp"], pk["w1"], pk["b1"], pk["w2"], pk["b2"],
      pk["w3"], pk["b3"], pk["w4"], pk["b4"], pk["w5"], pk["b5"])

    # ---- kernel 2: fused _UtteranceExtractor over 8-row batch tiles --------
    Bp = _rup(B, 8)
    bm = 8
    mean2 = _pad_right(mean.reshape(B, Ap), (Bp, Ap))
    std2 = _pad_right(std.reshape(B, Ap), (Bp, Ap))

    ce_af = pl.CostEstimate(
        flops=2 * Bp * (2 * Ap * Op + Op * Op),
        transcendentals=0,
        bytes_accessed=int(2 * Bp * Ap * 4 + Bp * Op * 4
                           + (2 * Ap * Op + Op * Op) * 2 + 2 * Op * 4),
    )

    out = pl.pallas_call(
        _affine_kernel,
        out_shape=jax.ShapeDtypeStruct((Bp, Op), jnp.float32),
        grid=(Bp // bm,),
        in_specs=[
            pl.BlockSpec((bm, Ap), lambda i: (i, 0)),
            pl.BlockSpec((bm, Ap), lambda i: (i, 0)),
            pl.BlockSpec((Ap, Op), lambda i: (0, 0)),
            pl.BlockSpec((Ap, Op), lambda i: (0, 0)),
            pl.BlockSpec((1, Op), lambda i: (0, 0)),
            pl.BlockSpec((Op, Op), lambda i: (0, 0)),
            pl.BlockSpec((1, Op), lambda i: (0, 0)),
        ],
        out_specs=pl.BlockSpec((bm, Op), lambda i: (i, 0)),
        compiler_params=pltpu.CompilerParams(
            dimension_semantics=("parallel",)),
        cost_estimate=ce_af,
    )(mean2, std2, pk["w1m"], pk["w1s"], pk["b1a"], pk["w2a"], pk["b2a"])

    return out[:B, :dims["out"]]


# --------------------------- pure-JAX reference -------------------------------

def reference_forward(params, x, x_len):
    """Pure-JAX reference mirroring the kernel math (bf16 matmuls, f32 acc)."""
    bf16, f32 = jnp.bfloat16, jnp.float32
    wp, bp = params["projector"]
    h = jnp.einsum("btd,dh->bth", x.astype(bf16), wp.astype(bf16),
                   preferred_element_type=f32) + bp
    h = h.astype(bf16)
    n_layers = len(params["tdnns"])
    for li, (wt, bt, ctx, dil) in enumerate(params["tdnns"]):
        T = h.shape[1]
        t_out = T - dil * (ctx - 1)
        acc = jnp.einsum("btc,co->bto", h[:, 0:t_out, :], wt[0].astype(bf16),
                         preferred_element_type=f32)
        for c in range(1, ctx):
            s = c * dil
            acc = acc + jnp.einsum("btc,co->bto", h[:, s:s + t_out, :],
                                   wt[c].astype(bf16),
                                   preferred_element_type=f32)
        y = jnp.maximum(acc + bt, 0.0)
        h = y.astype(bf16) if li + 1 < n_layers else y
    x_len = x_len - XVECTOR_TDNNS_LENGTH_REDUCTION
    T = h.shape[1]
    mask = (jnp.arange(T)[None, :, None] < x_len[:, None, None]).astype(f32)
    n = x_len.astype(f32)[:, None]
    hm = h * mask
    s1 = jnp.sum(hm, axis=1)
    s2 = jnp.sum(hm * h, axis=1)
    mean = s1 / n
    var = (s2 - mean * s1) / jnp.maximum(n - 1.0, 1.0)
    std = jnp.sqrt(jnp.maximum(var, 0.0))
    w1, b1 = params["affine1"]
    agg = mean.shape[1]
    hid = (jnp.dot(mean.astype(bf16), w1[:agg].astype(bf16),
                   preferred_element_type=f32)
           + jnp.dot(std.astype(bf16), w1[agg:].astype(bf16),
                     preferred_element_type=f32))
    hid = jnp.maximum(hid + b1, 0.0).astype(bf16)
    w2, b2 = params["affine2"]
    out = jnp.dot(hid, w2.astype(bf16), preferred_element_type=f32)
    return jnp.maximum(out + b2, 0.0)


# --------------------------- main ---------------------------------------------

if __name__ == "__main__":
    key = jax.random.PRNGKey(0)
    k_param, k_x = jax.random.split(key)

    # Small shapes consistent with the module (constructor args scaled down).
    B, T = 2, 24
    input_size, hidden_size, aggregation_size, output_size = 24, 32, 48, 16

    params = init_params(k_param, input_size, output_size=output_size,
                         hidden_size=hidden_size,
                         aggregation_size=aggregation_size)
    packed = pack_params(params)

    x = jax.random.normal(k_x, (B, T, input_size), jnp.float32)
    x_len = jnp.array([24, 20], dtype=jnp.int32)

    # Mirror the module's assertion about minimum sequence length.
    assert int(np.sum(np.asarray(x_len) - XVECTOR_TDNNS_LENGTH_REDUCTION <= 0)) == 0, \
        "The input sequence is too short for the X-vector model"

    forward = jax.jit(functools.partial(superb_xvector_forward, packed))
    out = jax.block_until_ready(forward(x, x_len))
    assert out.shape == (B, output_size), out.shape

    ref = jax.block_until_ready(reference_forward(params, x, x_len))
    np.testing.assert_allclose(np.asarray(out), np.asarray(ref),
                               rtol=2e-3, atol=2e-3)

    print("KERNEL_OK")
</pallas_src>

<mosaic_0001>
module attributes {stable_mosaic.version = 11 : i64} {
  func.func @_backbone_pool_kernel(%arg0: i32, %arg1: memref<2xi32, #tpu.memory_space<smem>>, %arg2: memref<1x24x128xbf16, #tpu.memory_space<vmem>>, %arg3: memref<128x128xbf16, #tpu.memory_space<vmem>>, %arg4: memref<1x128xf32, #tpu.memory_space<vmem>>, %arg5: memref<5x128x128xbf16, #tpu.memory_space<vmem>>, %arg6: memref<1x128xf32, #tpu.memory_space<vmem>>, %arg7: memref<3x128x128xbf16, #tpu.memory_space<vmem>>, %arg8: memref<1x128xf32, #tpu.memory_space<vmem>>, %arg9: memref<3x128x128xbf16, #tpu.memory_space<vmem>>, %arg10: memref<1x128xf32, #tpu.memory_space<vmem>>, %arg11: memref<1x128x128xbf16, #tpu.memory_space<vmem>>, %arg12: memref<1x128xf32, #tpu.memory_space<vmem>>, %arg13: memref<1x128x128xbf16, #tpu.memory_space<vmem>>, %arg14: memref<1x128xf32, #tpu.memory_space<vmem>>, %arg15: memref<1x1x128xf32, #tpu.memory_space<vmem>>, %arg16: memref<1x1x128xf32, #tpu.memory_space<vmem>>) attributes {dimension_semantics = [#tpu.dimension_semantics<parallel>], iteration_bounds = array<i64: 2>, scalar_prefetch = 1 : i64, scratch_operands = 0 : i64, tpu.core_type = #tpu.core_type<tc>, window_params = [{transform_indices = @transform_0, window_bounds = array<i64: 1, 24, 128>}, {pipeline_mode = #tpu.pipeline_mode<synchronous>, transform_indices = @transform_1, window_bounds = array<i64: 128, 128>}, {pipeline_mode = #tpu.pipeline_mode<synchronous>, transform_indices = @transform_2, window_bounds = array<i64: 1, 128>}, {pipeline_mode = #tpu.pipeline_mode<synchronous>, transform_indices = @transform_3, window_bounds = array<i64: 5, 128, 128>}, {pipeline_mode = #tpu.pipeline_mode<synchronous>, transform_indices = @transform_4, window_bounds = array<i64: 1, 128>}, {pipeline_mode = #tpu.pipeline_mode<synchronous>, transform_indices = @transform_5, window_bounds = array<i64: 3, 128, 128>}, {pipeline_mode = #tpu.pipeline_mode<synchronous>, transform_indices = @transform_6, window_bounds = array<i64: 1, 128>}, {pipeline_mode = #tpu.pipeline_mode<synchronous>, transform_indices = @transform_7, window_bounds = array<i64: 3, 128, 128>}, {pipeline_mode = #tpu.pipeline_mode<synchronous>, transform_indices = @transform_8, window_bounds = array<i64: 1, 128>}, {pipeline_mode = #tpu.pipeline_mode<synchronous>, transform_indices = @transform_9, window_bounds = array<i64: 1, 128, 128>}, {pipeline_mode = #tpu.pipeline_mode<synchronous>, transform_indices = @transform_10, window_bounds = array<i64: 1, 128>}, {pipeline_mode = #tpu.pipeline_mode<synchronous>, transform_indices = @transform_11, window_bounds = array<i64: 1, 128, 128>}, {pipeline_mode = #tpu.pipeline_mode<synchronous>, transform_indices = @transform_12, window_bounds = array<i64: 1, 128>}, {transform_indices = @transform_13, window_bounds = array<i64: 1, 1, 128>}, {transform_indices = @transform_14, window_bounds = array<i64: 1, 1, 128>}]} {
    %c0 = arith.constant 0 : index
    %c0_0 = arith.constant 0 : index
    %c0_1 = arith.constant 0 : index
    %0 = vector.load %arg2[%c0, %c0_0, %c0_1] : memref<1x24x128xbf16, #tpu.memory_space<vmem>>, vector<1x24x128xbf16>
    %1 = vector.shape_cast %0 : vector<1x24x128xbf16> to vector<24x128xbf16>
    %c0_2 = arith.constant 0 : index
    %c0_3 = arith.constant 0 : index
    %2 = vector.load %arg3[%c0_2, %c0_3] : memref<128x128xbf16, #tpu.memory_space<vmem>>, vector<128x128xbf16>
    %cst = arith.constant dense<0.000000e+00> : vector<24x128xf32>
    %3 = tpu.matmul %1, %2, %cst {dimension_numbers = #tpu.dot_dimension_numbers<[1], [0], [0], [1], [0, 0, 1, 1], [], []>} : vector<24x128xbf16>, vector<128x128xbf16>, vector<24x128xf32> -> vector<24x128xf32>
    %c0_4 = arith.constant 0 : index
    %c0_5 = arith.constant 0 : index
    %4 = vector.load %arg4[%c0_4, %c0_5] : memref<1x128xf32, #tpu.memory_space<vmem>>, vector<1x128xf32>
    %5 = vector.broadcast %4 : vector<1x128xf32> to vector<24x128xf32>
    %6 = arith.addf %3, %5 : vector<24x128xf32>
    %7 = vector.extract_strided_slice %6 {offsets = [0, 0], sizes = [20, 128], strides = [1, 1]} : vector<24x128xf32> to vector<20x128xf32>
    %8 = arith.truncf %7 : vector<20x128xf32> to vector<20x128xbf16>
    %c0_6 = arith.constant 0 : index
    %c0_7 = arith.constant 0 : index
    %c0_8 = arith.constant 0 : index
    %9 = vector.load %arg5[%c0_6, %c0_7, %c0_8] : memref<5x128x128xbf16, #tpu.memory_space<vmem>>, vector<1x128x128xbf16>
    %10 = vector.shape_cast %9 : vector<1x128x128xbf16> to vector<128x128xbf16>
    %cst_9 = arith.constant dense<0.000000e+00> : vector<20x128xf32>
    %11 = tpu.matmul %8, %10, %cst_9 {dimension_numbers = #tpu.dot_dimension_numbers<[1], [0], [0], [1], [0, 0, 1, 1], [], []>} : vector<20x128xbf16>, vector<128x128xbf16>, vector<20x128xf32> -> vector<20x128xf32>
    %12 = vector.extract_strided_slice %6 {offsets = [1, 0], sizes = [20, 128], strides = [1, 1]} : vector<24x128xf32> to vector<20x128xf32>
    %13 = arith.truncf %12 : vector<20x128xf32> to vector<20x128xbf16>
    %c1 = arith.constant 1 : index
    %c0_10 = arith.constant 0 : index
    %c0_11 = arith.constant 0 : index
    %14 = vector.load %arg5[%c1, %c0_10, %c0_11] : memref<5x128x128xbf16, #tpu.memory_space<vmem>>, vector<1x128x128xbf16>
    %15 = vector.shape_cast %14 : vector<1x128x128xbf16> to vector<128x128xbf16>
    %cst_12 = arith.constant dense<0.000000e+00> : vector<20x128xf32>
    %16 = tpu.matmul %13, %15, %cst_12 {dimension_numbers = #tpu.dot_dimension_numbers<[1], [0], [0], [1], [0, 0, 1, 1], [], []>} : vector<20x128xbf16>, vector<128x128xbf16>, vector<20x128xf32> -> vector<20x128xf32>
    %17 = arith.addf %11, %16 : vector<20x128xf32>
    %18 = vector.extract_strided_slice %6 {offsets = [2, 0], sizes = [20, 128], strides = [1, 1]} : vector<24x128xf32> to vector<20x128xf32>
    %19 = arith.truncf %18 : vector<20x128xf32> to vector<20x128xbf16>
    %c2 = arith.constant 2 : index
    %c0_13 = arith.constant 0 : index
    %c0_14 = arith.constant 0 : index
    %20 = vector.load %arg5[%c2, %c0_13, %c0_14] : memref<5x128x128xbf16, #tpu.memory_space<vmem>>, vector<1x128x128xbf16>
    %21 = vector.shape_cast %20 : vector<1x128x128xbf16> to vector<128x128xbf16>
    %cst_15 = arith.constant dense<0.000000e+00> : vector<20x128xf32>
    %22 = tpu.matmul %19, %21, %cst_15 {dimension_numbers = #tpu.dot_dimension_numbers<[1], [0], [0], [1], [0, 0, 1, 1], [], []>} : vector<20x128xbf16>, vector<128x128xbf16>, vector<20x128xf32> -> vector<20x128xf32>
    %23 = arith.addf %17, %22 : vector<20x128xf32>
    %24 = vector.extract_strided_slice %6 {offsets = [3, 0], sizes = [20, 128], strides = [1, 1]} : vector<24x128xf32> to vector<20x128xf32>
    %25 = arith.truncf %24 : vector<20x128xf32> to vector<20x128xbf16>
    %c3 = arith.constant 3 : index
    %c0_16 = arith.constant 0 : index
    %c0_17 = arith.constant 0 : index
    %26 = vector.load %arg5[%c3, %c0_16, %c0_17] : memref<5x128x128xbf16, #tpu.memory_space<vmem>>, vector<1x128x128xbf16>
    %27 = vector.shape_cast %26 : vector<1x128x128xbf16> to vector<128x128xbf16>
    %cst_18 = arith.constant dense<0.000000e+00> : vector<20x128xf32>
    %28 = tpu.matmul %25, %27, %cst_18 {dimension_numbers = #tpu.dot_dimension_numbers<[1], [0], [0], [1], [0, 0, 1, 1], [], []>} : vector<20x128xbf16>, vector<128x128xbf16>, vector<20x128xf32> -> vector<20x128xf32>
    %29 = arith.addf %23, %28 : vector<20x128xf32>
    %30 = vector.extract_strided_slice %6 {offsets = [4, 0], sizes = [20, 128], strides = [1, 1]} : vector<24x128xf32> to vector<20x128xf32>
    %31 = arith.truncf %30 : vector<20x128xf32> to vector<20x128xbf16>
    %c4 = arith.constant 4 : index
    %c0_19 = arith.constant 0 : index
    %c0_20 = arith.constant 0 : index
    %32 = vector.load %arg5[%c4, %c0_19, %c0_20] : memref<5x128x128xbf16, #tpu.memory_space<vmem>>, vector<1x128x128xbf16>
    %33 = vector.shape_cast %32 : vector<1x128x128xbf16> to vector<128x128xbf16>
    %cst_21 = arith.constant dense<0.000000e+00> : vector<20x128xf32>
    %34 = tpu.matmul %31, %33, %cst_21 {dimension_numbers = #tpu.dot_dimension_numbers<[1], [0], [0], [1], [0, 0, 1, 1], [], []>} : vector<20x128xbf16>, vector<128x128xbf16>, vector<20x128xf32> -> vector<20x128xf32>
    %35 = arith.addf %29, %34 : vector<20x128xf32>
    %c0_22 = arith.constant 0 : index
    %c0_23 = arith.constant 0 : index
    %36 = vector.load %arg6[%c0_22, %c0_23] : memref<1x128xf32, #tpu.memory_space<vmem>>, vector<1x128xf32>
    %37 = vector.broadcast %36 : vector<1x128xf32> to vector<20x128xf32>
    %38 = arith.addf %35, %37 : vector<20x128xf32>
    %cst_24 = arith.constant 0.000000e+00 : f32
    %39 = vector.broadcast %cst_24 : f32 to vector<20x128xf32>
    %40 = arith.maximumf %38, %39 : vector<20x128xf32>
    %41 = vector.extract_strided_slice %40 {offsets = [0, 0], sizes = [16, 128], strides = [1, 1]} : vector<20x128xf32> to vector<16x128xf32>
    %42 = arith.truncf %41 : vector<16x128xf32> to vector<16x128xbf16>
    %c0_25 = arith.constant 0 : index
    %c0_26 = arith.constant 0 : index
    %c0_27 = arith.constant 0 : index
    %43 = vector.load %arg7[%c0_25, %c0_26, %c0_27] : memref<3x128x128xbf16, #tpu.memory_space<vmem>>, vector<1x128x128xbf16>
    %44 = vector.shape_cast %43 : vector<1x128x128xbf16> to vector<128x128xbf16>
    %cst_28 = arith.constant dense<0.000000e+00> : vector<16x128xf32>
    %45 = tpu.matmul %42, %44, %cst_28 {dimension_numbers = #tpu.dot_dimension_numbers<[1], [0], [0], [1], [0, 0, 1, 1], [], []>} : vector<16x128xbf16>, vector<128x128xbf16>, vector<16x128xf32> -> vector<16x128xf32>
    %46 = vector.extract_strided_slice %40 {offsets = [2, 0], sizes = [16, 128], strides = [1, 1]} : vector<20x128xf32> to vector<16x128xf32>
    %47 = arith.truncf %46 : vector<16x128xf32> to vector<16x128xbf16>
    %c1_29 = arith.constant 1 : index
    %c0_30 = arith.constant 0 : index
    %c0_31 = arith.constant 0 : index
    %48 = vector.load %arg7[%c1_29, %c0_30, %c0_31] : memref<3x128x128xbf16, #tpu.memory_space<vmem>>, vector<1x128x128xbf16>
    %49 = vector.shape_cast %48 : vector<1x128x128xbf16> to vector<128x128xbf16>
    %cst_32 = arith.constant dense<0.000000e+00> : vector<16x128xf32>
    %50 = tpu.matmul %47, %49, %cst_32 {dimension_numbers = #tpu.dot_dimension_numbers<[1], [0], [0], [1], [0, 0, 1, 1], [], []>} : vector<16x128xbf16>, vector<128x128xbf16>, vector<16x128xf32> -> vector<16x128xf32>
    %51 = arith.addf %45, %50 : vector<16x128xf32>
    %52 = vector.extract_strided_slice %40 {offsets = [4, 0], sizes = [16, 128], strides = [1, 1]} : vector<20x128xf32> to vector<16x128xf32>
    %53 = arith.truncf %52 : vector<16x128xf32> to vector<16x128xbf16>
    %c2_33 = arith.constant 2 : index
    %c0_34 = arith.constant 0 : index
    %c0_35 = arith.constant 0 : index
    %54 = vector.load %arg7[%c2_33, %c0_34, %c0_35] : memref<3x128x128xbf16, #tpu.memory_space<vmem>>, vector<1x128x128xbf16>
    %55 = vector.shape_cast %54 : vector<1x128x128xbf16> to vector<128x128xbf16>
    %cst_36 = arith.constant dense<0.000000e+00> : vector<16x128xf32>
    %56 = tpu.matmul %53, %55, %cst_36 {dimension_numbers = #tpu.dot_dimension_numbers<[1], [0], [0], [1], [0, 0, 1, 1], [], []>} : vector<16x128xbf16>, vector<128x128xbf16>, vector<16x128xf32> -> vector<16x128xf32>
    %57 = arith.addf %51, %56 : vector<16x128xf32>
    %c0_37 = arith.constant 0 : index
    %c0_38 = arith.constant 0 : index
    %58 = vector.load %arg8[%c0_37, %c0_38] : memref<1x128xf32, #tpu.memory_space<vmem>>, vector<1x128xf32>
    %59 = vector.broadcast %58 : vector<1x128xf32> to vector<16x128xf32>
    %60 = arith.addf %57, %59 : vector<16x128xf32>
    %cst_39 = arith.constant 0.000000e+00 : f32
    %61 = vector.broadcast %cst_39 : f32 to vector<16x128xf32>
    %62 = arith.maximumf %60, %61 : vector<16x128xf32>
    %63 = vector.extract_strided_slice %62 {offsets = [0, 0], sizes = [10, 128], strides = [1, 1]} : vector<16x128xf32> to vector<10x128xf32>
    %64 = arith.truncf %63 : vector<10x128xf32> to vector<10x128xbf16>
    %c0_40 = arith.constant 0 : index
    %c0_41 = arith.constant 0 : index
    %c0_42 = arith.constant 0 : index
    %65 = vector.load %arg9[%c0_40, %c0_41, %c0_42] : memref<3x128x128xbf16, #tpu.memory_space<vmem>>, vector<1x128x128xbf16>
    %66 = vector.shape_cast %65 : vector<1x128x128xbf16> to vector<128x128xbf16>
    %cst_43 = arith.constant dense<0.000000e+00> : vector<10x128xf32>
    %67 = tpu.matmul %64, %66, %cst_43 {dimension_numbers = #tpu.dot_dimension_numbers<[1], [0], [0], [1], [0, 0, 1, 1], [], []>} : vector<10x128xbf16>, vector<128x128xbf16>, vector<10x128xf32> -> vector<10x128xf32>
    %68 = vector.extract_strided_slice %62 {offsets = [3, 0], sizes = [10, 128], strides = [1, 1]} : vector<16x128xf32> to vector<10x128xf32>
    %69 = arith.truncf %68 : vector<10x128xf32> to vector<10x128xbf16>
    %c1_44 = arith.constant 1 : index
    %c0_45 = arith.constant 0 : index
    %c0_46 = arith.constant 0 : index
    %70 = vector.load %arg9[%c1_44, %c0_45, %c0_46] : memref<3x128x128xbf16, #tpu.memory_space<vmem>>, vector<1x128x128xbf16>
    %71 = vector.shape_cast %70 : vector<1x128x128xbf16> to vector<128x128xbf16>
    %cst_47 = arith.constant dense<0.000000e+00> : vector<10x128xf32>
    %72 = tpu.matmul %69, %71, %cst_47 {dimension_numbers = #tpu.dot_dimension_numbers<[1], [0], [0], [1], [0, 0, 1, 1], [], []>} : vector<10x128xbf16>, vector<128x128xbf16>, vector<10x128xf32> -> vector<10x128xf32>
    %73 = arith.addf %67, %72 : vector<10x128xf32>
    %74 = vector.extract_strided_slice %62 {offsets = [6, 0], sizes = [10, 128], strides = [1, 1]} : vector<16x128xf32> to vector<10x128xf32>
    %75 = arith.truncf %74 : vector<10x128xf32> to vector<10x128xbf16>
    %c2_48 = arith.constant 2 : index
    %c0_49 = arith.constant 0 : index
    %c0_50 = arith.constant 0 : index
    %76 = vector.load %arg9[%c2_48, %c0_49, %c0_50] : memref<3x128x128xbf16, #tpu.memory_space<vmem>>, vector<1x128x128xbf16>
    %77 = vector.shape_cast %76 : vector<1x128x128xbf16> to vector<128x128xbf16>
    %cst_51 = arith.constant dense<0.000000e+00> : vector<10x128xf32>
    %78 = tpu.matmul %75, %77, %cst_51 {dimension_numbers = #tpu.dot_dimension_numbers<[1], [0], [0], [1], [0, 0, 1, 1], [], []>} : vector<10x128xbf16>, vector<128x128xbf16>, vector<10x128xf32> -> vector<10x128xf32>
    %79 = arith.addf %73, %78 : vector<10x128xf32>
    %c0_52 = arith.constant 0 : index
    %c0_53 = arith.constant 0 : index
    %80 = vector.load %arg10[%c0_52, %c0_53] : memref<1x128xf32, #tpu.memory_space<vmem>>, vector<1x128xf32>
    %81 = vector.broadcast %80 : vector<1x128xf32> to vector<10x128xf32>
    %82 = arith.addf %79, %81 : vector<10x128xf32>
    %cst_54 = arith.constant 0.000000e+00 : f32
    %83 = vector.broadcast %cst_54 : f32 to vector<10x128xf32>
    %84 = arith.maximumf %82, %83 : vector<10x128xf32>
    %85 = arith.truncf %84 : vector<10x128xf32> to vector<10x128xbf16>
    %c0_55 = arith.constant 0 : index
    %c0_56 = arith.constant 0 : index
    %c0_57 = arith.constant 0 : index
    %86 = vector.load %arg11[%c0_55, %c0_56, %c0_57] : memref<1x128x128xbf16, #tpu.memory_space<vmem>>, vector<1x128x128xbf16>
    %87 = vector.shape_cast %86 : vector<1x128x128xbf16> to vector<128x128xbf16>
    %cst_58 = arith.constant dense<0.000000e+00> : vector<10x128xf32>
    %88 = tpu.matmul %85, %87, %cst_58 {dimension_numbers = #tpu.dot_dimension_numbers<[1], [0], [0], [1], [0, 0, 1, 1], [], []>} : vector<10x128xbf16>, vector<128x128xbf16>, vector<10x128xf32> -> vector<10x128xf32>
    %c0_59 = arith.constant 0 : index
    %c0_60 = arith.constant 0 : index
    %89 = vector.load %arg12[%c0_59, %c0_60] : memref<1x128xf32, #tpu.memory_space<vmem>>, vector<1x128xf32>
    %90 = vector.broadcast %89 : vector<1x128xf32> to vector<10x128xf32>
    %91 = arith.addf %88, %90 : vector<10x128xf32>
    %cst_61 = arith.constant 0.000000e+00 : f32
    %92 = vector.broadcast %cst_61 : f32 to vector<10x128xf32>
    %93 = arith.maximumf %91, %92 : vector<10x128xf32>
    %94 = arith.truncf %93 : vector<10x128xf32> to vector<10x128xbf16>
    %c0_62 = arith.constant 0 : index
    %c0_63 = arith.constant 0 : index
    %c0_64 = arith.constant 0 : index
    %95 = vector.load %arg13[%c0_62, %c0_63, %c0_64] : memref<1x128x128xbf16, #tpu.memory_space<vmem>>, vector<1x128x128xbf16>
    %96 = vector.shape_cast %95 : vector<1x128x128xbf16> to vector<128x128xbf16>
    %cst_65 = arith.constant dense<0.000000e+00> : vector<10x128xf32>
    %97 = tpu.matmul %94, %96, %cst_65 {dimension_numbers = #tpu.dot_dimension_numbers<[1], [0], [0], [1], [0, 0, 1, 1], [], []>} : vector<10x128xbf16>, vector<128x128xbf16>, vector<10x128xf32> -> vector<10x128xf32>
    %c0_66 = arith.constant 0 : index
    %c0_67 = arith.constant 0 : index
    %98 = vector.load %arg14[%c0_66, %c0_67] : memref<1x128xf32, #tpu.memory_space<vmem>>, vector<1x128xf32>
    %99 = vector.broadcast %98 : vector<1x128xf32> to vector<10x128xf32>
    %100 = arith.addf %97, %99 : vector<10x128xf32>
    %cst_68 = arith.constant 0.000000e+00 : f32
    %101 = vector.broadcast %cst_68 : f32 to vector<10x128xf32>
    %102 = arith.maximumf %100, %101 : vector<10x128xf32>
    %103 = arith.index_cast %arg0 : i32 to index
    %104 = memref.load %arg1[%103] : memref<2xi32, #tpu.memory_space<smem>>
    %c14_i32 = arith.constant 14 : i32
    %105 = arith.subi %104, %c14_i32 : i32
    %106 = arith.sitofp %105 : i32 to f32
    %107 = tpu.iota {dimensions = array<i32: 0>} : vector<10x128xi32>
    %108 = vector.broadcast %105 : i32 to vector<10x128xi32>
    %109 = arith.cmpi slt, %107, %108 : vector<10x128xi32>
    %110 = arith.extui %109 : vector<10x128xi1> to vector<10x128xi32>
    %111 = arith.sitofp %110 : vector<10x128xi32> to vector<10x128xf32>
    %112 = arith.mulf %102, %111 : vector<10x128xf32>
    %cst_69 = arith.constant dense<0.000000e+00> : vector<128xf32>
    %113 = vector.multi_reduction <add>, %112, %cst_69 [0] : vector<10x128xf32> to vector<128xf32>
    %114 = vector.shape_cast %113 : vector<128xf32> to vector<1x128xf32>
    %115 = arith.mulf %112, %102 : vector<10x128xf32>
    %cst_70 = arith.constant dense<0.000000e+00> : vector<128xf32>
    %116 = vector.multi_reduction <add>, %115, %cst_70 [0] : vector<10x128xf32> to vector<128xf32>
    %117 = vector.shape_cast %116 : vector<128xf32> to vector<1x128xf32>
    %118 = vector.broadcast %106 : f32 to vector<1x128xf32>
    %119 = arith.divf %114, %118 : vector<1x128xf32>
    %120 = arith.mulf %119, %114 : vector<1x128xf32>
    %121 = arith.subf %117, %120 : vector<1x128xf32>
    %cst_71 = arith.constant 1.000000e+00 : f32
    %122 = arith.subf %106, %cst_71 : f32
    %cst_72 = arith.constant 1.000000e+00 : f32
    %123 = arith.maximumf %122, %cst_72 : f32
    %124 = vector.broadcast %123 : f32 to vector<1x128xf32>
    %125 = arith.divf %121, %124 : vector<1x128xf32>
    %cst_73 = arith.constant 0.000000e+00 : f32
    %126 = vector.broadcast %cst_73 : f32 to vector<1x128xf32>
    %127 = arith.maximumf %125, %126 : vector<1x128xf32>
    %128 = math.sqrt %127 : vector<1x128xf32>
    %c0_74 = arith.constant 0 : index
    %c0_75 = arith.constant 0 : index
    %c0_76 = arith.constant 0 : index
    %129 = vector.load %arg15[%c0_74, %c0_75, %c0_76] : memref<1x1x128xf32, #tpu.memory_space<vmem>>, vector<1x1x128xf32>
    %130 = vector.shape_cast %129 : vector<1x1x128xf32> to vector<1x128xf32>
    %131 = vector.shape_cast %119 : vector<1x128xf32> to vector<1x1x128xf32>
    tpu.vector_store %arg15[%c0_74, %c0_75, %c0_76], %131 {strides = array<i32>} : memref<1x1x128xf32, #tpu.memory_space<vmem>>, vector<1x1x128xf32>,
    %c0_77 = arith.constant 0 : index
    %c0_78 = arith.constant 0 : index
    %c0_79 = arith.constant 0 : index
    %132 = vector.load %arg16[%c0_77, %c0_78, %c0_79] : memref<1x1x128xf32, #tpu.memory_space<vmem>>, vector<1x1x128xf32>
    %133 = vector.shape_cast %132 : vector<1x1x128xf32> to vector<1x128xf32>
    %134 = vector.shape_cast %128 : vector<1x128xf32> to vector<1x1x128xf32>
    tpu.vector_store %arg16[%c0_77, %c0_78, %c0_79], %134 {strides = array<i32>} : memref<1x1x128xf32, #tpu.memory_space<vmem>>, vector<1x1x128xf32>,
    return
  }
  func.func @transform_0(%arg0: i32, %arg1: memref<2xi32, #tpu.memory_space<smem>>) -> (i32, i32, i32) {
    %c0_i32 = arith.constant 0 : i32
    %c0_i32_0 = arith.constant 0 : i32
    %c0_i32_1 = arith.constant 0 : i32
    return %arg0, %c0_i32, %c0_i32_0 : i32, i32, i32
  }
  func.func @transform_1(%arg0: i32, %arg1: memref<2xi32, #tpu.memory_space<smem>>) -> (i32, i32) {
    %c0_i32 = arith.constant 0 : i32
    %c0_i32_0 = arith.constant 0 : i32
    %c0_i32_1 = arith.constant 0 : i32
    return %c0_i32, %c0_i32_0 : i32, i32
  }
  func.func @transform_2(%arg0: i32, %arg1: memref<2xi32, #tpu.memory_space<smem>>) -> (i32, i32) {
    %c0_i32 = arith.constant 0 : i32
    %c0_i32_0 = arith.constant 0 : i32
    %c0_i32_1 = arith.constant 0 : i32
    return %c0_i32, %c0_i32_0 : i32, i32
  }
  func.func @transform_3(%arg0: i32, %arg1: memref<2xi32, #tpu.memory_space<smem>>) -> (i32, i32, i32) {
    %c0_i32 = arith.constant 0 : i32
    %c0_i32_0 = arith.constant 0 : i32
    %c0_i32_1 = arith.constant 0 : i32
    %c0_i32_2 = arith.constant 0 : i32
    return %c0_i32, %c0_i32_0, %c0_i32_1 : i32, i32, i32
  }
  func.func @transform_4(%arg0: i32, %arg1: memref<2xi32, #tpu.memory_space<smem>>) -> (i32, i32) {
    %c0_i32 = arith.constant 0 : i32
    %c0_i32_0 = arith.constant 0 : i32
    %c0_i32_1 = arith.constant 0 : i32
    return %c0_i32, %c0_i32_0 : i32, i32
  }
  func.func @transform_5(%arg0: i32, %arg1: memref<2xi32, #tpu.memory_space<smem>>) -> (i32, i32, i32) {
    %c0_i32 = arith.constant 0 : i32
    %c0_i32_0 = arith.constant 0 : i32
    %c0_i32_1 = arith.constant 0 : i32
    %c0_i32_2 = arith.constant 0 : i32
    return %c0_i32, %c0_i32_0, %c0_i32_1 : i32, i32, i32
  }
  func.func @transform_6(%arg0: i32, %arg1: memref<2xi32, #tpu.memory_space<smem>>) -> (i32, i32) {
    %c0_i32 = arith.constant 0 : i32
    %c0_i32_0 = arith.constant 0 : i32
    %c0_i32_1 = arith.constant 0 : i32
    return %c0_i32, %c0_i32_0 : i32, i32
  }
  func.func @transform_7(%arg0: i32, %arg1: memref<2xi32, #tpu.memory_space<smem>>) -> (i32, i32, i32) {
    %c0_i32 = arith.constant 0 : i32
    %c0_i32_0 = arith.constant 0 : i32
    %c0_i32_1 = arith.constant 0 : i32
    %c0_i32_2 = arith.constant 0 : i32
    return %c0_i32, %c0_i32_0, %c0_i32_1 : i32, i32, i32
  }
  func.func @transform_8(%arg0: i32, %arg1: memref<2xi32, #tpu.memory_space<smem>>) -> (i32, i32) {
    %c0_i32 = arith.constant 0 : i32
    %c0_i32_0 = arith.constant 0 : i32
    %c0_i32_1 = arith.constant 0 : i32
    return %c0_i32, %c0_i32_0 : i32, i32
  }
  func.func @transform_9(%arg0: i32, %arg1: memref<2xi32, #tpu.memory_space<smem>>) -> (i32, i32, i32) {
    %c0_i32 = arith.constant 0 : i32
    %c0_i32_0 = arith.constant 0 : i32
    %c0_i32_1 = arith.constant 0 : i32
    %c0_i32_2 = arith.constant 0 : i32
    return %c0_i32, %c0_i32_0, %c0_i32_1 : i32, i32, i32
  }
  func.func @transform_10(%arg0: i32, %arg1: memref<2xi32, #tpu.memory_space<smem>>) -> (i32, i32) {
    %c0_i32 = arith.constant 0 : i32
    %c0_i32_0 = arith.constant 0 : i32
    %c0_i32_1 = arith.constant 0 : i32
    return %c0_i32, %c0_i32_0 : i32, i32
  }
  func.func @transform_11(%arg0: i32, %arg1: memref<2xi32, #tpu.memory_space<smem>>) -> (i32, i32, i32) {
    %c0_i32 = arith.constant 0 : i32
    %c0_i32_0 = arith.constant 0 : i32
    %c0_i32_1 = arith.constant 0 : i32
    %c0_i32_2 = arith.constant 0 : i32
    return %c0_i32, %c0_i32_0, %c0_i32_1 : i32, i32, i32
  }
  func.func @transform_12(%arg0: i32, %arg1: memref<2xi32, #tpu.memory_space<smem>>) -> (i32, i32) {
    %c0_i32 = arith.constant 0 : i32
    %c0_i32_0 = arith.constant 0 : i32
    %c0_i32_1 = arith.constant 0 : i32
    return %c0_i32, %c0_i32_0 : i32, i32
  }
  func.func @transform_13(%arg0: i32, %arg1: memref<2xi32, #tpu.memory_space<smem>>) -> (i32, i32, i32) {
    %c0_i32 = arith.constant 0 : i32
    %c0_i32_0 = arith.constant 0 : i32
    %c0_i32_1 = arith.constant 0 : i32
    return %arg0, %c0_i32, %c0_i32_0 : i32, i32, i32
  }
  func.func @transform_14(%arg0: i32, %arg1: memref<2xi32, #tpu.memory_space<smem>>) -> (i32, i32, i32) {
    %c0_i32 = arith.constant 0 : i32
    %c0_i32_0 = arith.constant 0 : i32
    %c0_i32_1 = arith.constant 0 : i32
    return %arg0, %c0_i32, %c0_i32_0 : i32, i32, i32
  }
}

module attributes {stable_mosaic.version = 11 : i64} {
  func.func @_affine_kernel(%arg0: i32, %arg1: memref<8x128xf32, #tpu.memory_space<vmem>>, %arg2: memref<8x128xf32, #tpu.memory_space<vmem>>, %arg3: memref<128x128xbf16, #tpu.memory_space<vmem>>, %arg4: memref<128x128xbf16, #tpu.memory_space<vmem>>, %arg5: memref<1x128xf32, #tpu.memory_space<vmem>>, %arg6: memref<128x128xbf16, #tpu.memory_space<vmem>>, %arg7: memref<1x128xf32, #tpu.memory_space<vmem>>, %arg8: memref<8x128xf32, #tpu.memory_space<vmem>>) attributes {dimension_semantics = [#tpu.dimension_semantics<parallel>], iteration_bounds = array<i64: 1>, scalar_prefetch = 0 : i64, scratch_operands = 0 : i64, tpu.core_type = #tpu.core_type<tc>, window_params = [{transform_indices = @transform_0, window_bounds = array<i64: 8, 128>}, {transform_indices = @transform_1, window_bounds = array<i64: 8, 128>}, {pipeline_mode = #tpu.pipeline_mode<synchronous>, transform_indices = @transform_2, window_bounds = array<i64: 128, 128>}, {pipeline_mode = #tpu.pipeline_mode<synchronous>, transform_indices = @transform_3, window_bounds = array<i64: 128, 128>}, {pipeline_mode = #tpu.pipeline_mode<synchronous>, transform_indices = @transform_4, window_bounds = array<i64: 1, 128>}, {pipeline_mode = #tpu.pipeline_mode<synchronous>, transform_indices = @transform_5, window_bounds = array<i64: 128, 128>}, {pipeline_mode = #tpu.pipeline_mode<synchronous>, transform_indices = @transform_6, window_bounds = array<i64: 1, 128>}, {transform_indices = @transform_7, window_bounds = array<i64: 8, 128>}]} {
    %c0 = arith.constant 0 : index
    %c0_0 = arith.constant 0 : index
    %0 = vector.load %arg1[%c0, %c0_0] : memref<8x128xf32, #tpu.memory_space<vmem>>, vector<8x128xf32>
    %1 = arith.truncf %0 : vector<8x128xf32> to vector<8x128xbf16>
    %c0_1 = arith.constant 0 : index
    %c0_2 = arith.constant 0 : index
    %2 = vector.load %arg3[%c0_1, %c0_2] : memref<128x128xbf16, #tpu.memory_space<vmem>>, vector<128x128xbf16>
    %cst = arith.constant dense<0.000000e+00> : vector<8x128xf32>
    %3 = tpu.matmul %1, %2, %cst {dimension_numbers = #tpu.dot_dimension_numbers<[1], [0], [0], [1], [0, 0, 1, 1], [], []>} : vector<8x128xbf16>, vector<128x128xbf16>, vector<8x128xf32> -> vector<8x128xf32>
    %c0_3 = arith.constant 0 : index
    %c0_4 = arith.constant 0 : index
    %4 = vector.load %arg2[%c0_3, %c0_4] : memref<8x128xf32, #tpu.memory_space<vmem>>, vector<8x128xf32>
    %5 = arith.truncf %4 : vector<8x128xf32> to vector<8x128xbf16>
    %c0_5 = arith.constant 0 : index
    %c0_6 = arith.constant 0 : index
    %6 = vector.load %arg4[%c0_5, %c0_6] : memref<128x128xbf16, #tpu.memory_space<vmem>>, vector<128x128xbf16>
    %cst_7 = arith.constant dense<0.000000e+00> : vector<8x128xf32>
    %7 = tpu.matmul %5, %6, %cst_7 {dimension_numbers = #tpu.dot_dimension_numbers<[1], [0], [0], [1], [0, 0, 1, 1], [], []>} : vector<8x128xbf16>, vector<128x128xbf16>, vector<8x128xf32> -> vector<8x128xf32>
    %8 = arith.addf %3, %7 : vector<8x128xf32>
    %c0_8 = arith.constant 0 : index
    %c0_9 = arith.constant 0 : index
    %9 = vector.load %arg5[%c0_8, %c0_9] : memref<1x128xf32, #tpu.memory_space<vmem>>, vector<1x128xf32>
    %10 = vector.broadcast %9 : vector<1x128xf32> to vector<8x128xf32>
    %11 = arith.addf %8, %10 : vector<8x128xf32>
    %cst_10 = arith.constant 0.000000e+00 : f32
    %12 = vector.broadcast %cst_10 : f32 to vector<8x128xf32>
    %13 = arith.maximumf %11, %12 : vector<8x128xf32>
    %14 = arith.truncf %13 : vector<8x128xf32> to vector<8x128xbf16>
    %c0_11 = arith.constant 0 : index
    %c0_12 = arith.constant 0 : index
    %15 = vector.load %arg6[%c0_11, %c0_12] : memref<128x128xbf16, #tpu.memory_space<vmem>>, vector<128x128xbf16>
    %cst_13 = arith.constant dense<0.000000e+00> : vector<8x128xf32>
    %16 = tpu.matmul %14, %15, %cst_13 {dimension_numbers = #tpu.dot_dimension_numbers<[1], [0], [0], [1], [0, 0, 1, 1], [], []>} : vector<8x128xbf16>, vector<128x128xbf16>, vector<8x128xf32> -> vector<8x128xf32>
    %c0_14 = arith.constant 0 : index
    %c0_15 = arith.constant 0 : index
    %17 = vector.load %arg7[%c0_14, %c0_15] : memref<1x128xf32, #tpu.memory_space<vmem>>, vector<1x128xf32>
    %18 = vector.broadcast %17 : vector<1x128xf32> to vector<8x128xf32>
    %19 = arith.addf %16, %18 : vector<8x128xf32>
    %cst_16 = arith.constant 0.000000e+00 : f32
    %20 = vector.broadcast %cst_16 : f32 to vector<8x128xf32>
    %21 = arith.maximumf %19, %20 : vector<8x128xf32>
    %c0_17 = arith.constant 0 : index
    %c0_18 = arith.constant 0 : index
    %22 = vector.load %arg8[%c0_17, %c0_18] : memref<8x128xf32, #tpu.memory_space<vmem>>, vector<8x128xf32>
    tpu.vector_store %arg8[%c0_17, %c0_18], %21 {strides = array<i32>} : memref<8x128xf32, #tpu.memory_space<vmem>>, vector<8x128xf32>,
    return
  }
  func.func @transform_0(%arg0: i32) -> (i32, i32) {
    %c0_i32 = arith.constant 0 : i32
    %c0_i32_0 = arith.constant 0 : i32
    return %arg0, %c0_i32 : i32, i32
  }
  func.func @transform_1(%arg0: i32) -> (i32, i32) {
    %c0_i32 = arith.constant 0 : i32
    %c0_i32_0 = arith.constant 0 : i32
    return %arg0, %c0_i32 : i32, i32
  }
  func.func @transform_2(%arg0: i32) -> (i32, i32) {
    %c0_i32 = arith.constant 0 : i32
    %c0_i32_0 = arith.constant 0 : i32
    %c0_i32_1 = arith.constant 0 : i32
    return %c0_i32, %c0_i32_0 : i32, i32
  }
  func.func @transform_3(%arg0: i32) -> (i32, i32) {
    %c0_i32 = arith.constant 0 : i32
    %c0_i32_0 = arith.constant 0 : i32
    %c0_i32_1 = arith.constant 0 : i32
    return %c0_i32, %c0_i32_0 : i32, i32
  }
  func.func @transform_4(%arg0: i32) -> (i32, i32) {
    %c0_i32 = arith.constant 0 : i32
    %c0_i32_0 = arith.constant 0 : i32
    %c0_i32_1 = arith.constant 0 : i32
    return %c0_i32, %c0_i32_0 : i32, i32
  }
  func.func @transform_5(%arg0: i32) -> (i32, i32) {
    %c0_i32 = arith.constant 0 : i32
    %c0_i32_0 = arith.constant 0 : i32
    %c0_i32_1 = arith.constant 0 : i32
    return %c0_i32, %c0_i32_0 : i32, i32
  }
  func.func @transform_6(%arg0: i32) -> (i32, i32) {
    %c0_i32 = arith.constant 0 : i32
    %c0_i32_0 = arith.constant 0 : i32
    %c0_i32_1 = arith.constant 0 : i32
    return %c0_i32, %c0_i32_0 : i32, i32
  }
  func.func @transform_7(%arg0: i32) -> (i32, i32) {
    %c0_i32 = arith.constant 0 : i32
    %c0_i32_0 = arith.constant 0 : i32
    return %arg0, %c0_i32 : i32, i32
  }
}

</mosaic_0001>

<llo_original>
// kernel: superb_xvector_forward.3
$region0: #{superb_xvector_forward.3}
  #allocation0 [shape = 'u32[]', space=smem, size = 0x4, offset = 0x4, fixed_abs, tag = 'smem constant byte address 0x4 - core index']
  #allocation1 [shape = 'u32[72,128]{1,0:T(1,128)}', space=vmem, size = 0x9000, scoped, tag = 'internal scratch']
  %s0 = inlined_call_operand.vmem [shape: f32[8,128], index: 0, kind: input, shape index: {}]
  %s1 = inlined_call_operand.vmem [shape: f32[8,128], index: 1, kind: input, shape index: {}]
  %s2 = inlined_call_operand.vmem [shape: bf16[128,128], index: 2, kind: input, shape index: {}]
  %s3 = inlined_call_operand.vmem [shape: bf16[128,128], index: 3, kind: input, shape index: {}]
  %s4 = inlined_call_operand.vmem [shape: f32[1,128], index: 4, kind: input, shape index: {}]
  %s5 = inlined_call_operand.vmem [shape: bf16[128,128], index: 5, kind: input, shape index: {}]
  %s6 = inlined_call_operand.vmem [shape: f32[1,128], index: 6, kind: input, shape index: {}]
  %s7 = inlined_call_operand.vmem [shape: f32[8,128], index: 7, kind: output, shape index: {}]
  %s8 = sld [smem:[#allocation0]]
  $region38: #{superb_xvector_forward.3} parent=0
    _
  %s10 = ssub.s32 1, %s8
  %s11 = scalar_select 0, %s10, %s8
  // Predicated region
  $region2: #{superb_xvector_forward.3} parent=0 // pred_check
    _
  $region3: #{superb_xvector_forward.3} parent=0 // pred_check_branch
    %13 = sbr.rel (0) target = $region5
  $region4: #{superb_xvector_forward.3} parent=0 // pred_region
    _
  $region5: #{superb_xvector_forward.3} parent=0 // pred_fallthru
    _
  // Predicated region
  $region6: #{superb_xvector_forward.3} parent=0 // pred_check
    _
  $region7: #{superb_xvector_forward.3} parent=0 // pred_check_branch
    %15 = sbr.rel (0) target = $region9
  $region8: #{superb_xvector_forward.3} parent=0 // pred_region
    _
  $region9: #{superb_xvector_forward.3} parent=0 // pred_fallthru
    _
  // Predicated region
  $region10: #{superb_xvector_forward.3} parent=0 // pred_check
    _
  $region11: #{superb_xvector_forward.3} parent=0 // pred_check_branch
    %17 = sbr.rel (0) target = $region13
  $region12: #{superb_xvector_forward.3} parent=0 // pred_region
    _
  $region13: #{superb_xvector_forward.3} parent=0 // pred_fallthru
    _
  // Predicated region
  $region14: #{superb_xvector_forward.3} parent=0 // pred_check
    _
  $region15: #{superb_xvector_forward.3} parent=0 // pred_check_branch
    %19 = sbr.rel (0) target = $region17
  $region16: #{superb_xvector_forward.3} parent=0 // pred_region
    _
  $region17: #{superb_xvector_forward.3} parent=0 // pred_fallthru
    _
  // Predicated region
  $region18: #{superb_xvector_forward.3} parent=0 // pred_check
    _
  $region19: #{superb_xvector_forward.3} parent=0 // pred_check_branch
    %21 = sbr.rel (0) target = $region21
  $region20: #{superb_xvector_forward.3} parent=0 // pred_region
    _
  $region21: #{superb_xvector_forward.3} parent=0 // pred_fallthru
    _
  // Predicated region
  $region22: #{superb_xvector_forward.3} parent=0 // pred_check
    _
  $region23: #{superb_xvector_forward.3} parent=0 // pred_check_branch
    %23 = sbr.rel (0) target = $region25
  $region24: #{superb_xvector_forward.3} parent=0 // pred_region
    _
  $region25: #{superb_xvector_forward.3} parent=0 // pred_fallthru
    _
  // Predicated region
  $region26: #{superb_xvector_forward.3} parent=0 // pred_check
    _
  $region27: #{superb_xvector_forward.3} parent=0 // pred_check_branch
    %25 = sbr.rel (0) target = $region29
  $region28: #{superb_xvector_forward.3} parent=0 // pred_region
    _
  $region29: #{superb_xvector_forward.3} parent=0 // pred_fallthru
    _
  %v26 = vld [vmem:[%s0] sm:$0xff]
  %v27 = vpack.c.bf16 %v26, %v26
  %v28 = vld [vmem:[%s2] sm:$0xf]
  %v29 = vld [vmem:[%s2 + $0x4] sm:$0xf]
  %v30 = vld [vmem:[%s2 + $0x8] sm:$0xf]
  %v31 = vld [vmem:[%s2 + $0xc] sm:$0xf]
  %v32 = vld [vmem:[%s2 + $0x10] sm:$0xf]
  %v33 = vld [vmem:[%s2 + $0x14] sm:$0xf]
  %v34 = vld [vmem:[%s2 + $0x18] sm:$0xf]
  %v35 = vld [vmem:[%s2 + $0x1c] sm:$0xf]
  %v36 = vld [vmem:[%s2 + $0x20] sm:$0xf]
  %v37 = vld [vmem:[%s2 + $0x24] sm:$0xf]
  %v38 = vld [vmem:[%s2 + $0x28] sm:$0xf]
  %v39 = vld [vmem:[%s2 + $0x2c] sm:$0xf]
  %v40 = vld [vmem:[%s2 + $0x30] sm:$0xf]
  %v41 = vld [vmem:[%s2 + $0x34] sm:$0xf]
  %v42 = vld [vmem:[%s2 + $0x38] sm:$0xf]
  %v43 = vld [vmem:[%s2 + $0x3c] sm:$0xf]
  %v44 = vld [vmem:[%s1] sm:$0xff]
  %v45 = vpack.c.bf16 %v44, %v44
  %v46 = vld [vmem:[%s3] sm:$0xf]
  %v47 = vld [vmem:[%s3 + $0x4] sm:$0xf]
  %v48 = vld [vmem:[%s3 + $0x8] sm:$0xf]
  %v49 = vld [vmem:[%s3 + $0xc] sm:$0xf]
  %v50 = vld [vmem:[%s3 + $0x10] sm:$0xf]
  %v51 = vld [vmem:[%s3 + $0x14] sm:$0xf]
  %v52 = vld [vmem:[%s3 + $0x18] sm:$0xf]
  %v53 = vld [vmem:[%s3 + $0x1c] sm:$0xf]
  %v54 = vld [vmem:[%s3 + $0x20] sm:$0xf]
  %v55 = vld [vmem:[%s3 + $0x24] sm:$0xf]
  %v56 = vld [vmem:[%s3 + $0x28] sm:$0xf]
  %v57 = vld [vmem:[%s3 + $0x2c] sm:$0xf]
  %v58 = vld [vmem:[%s3 + $0x30] sm:$0xf]
  %v59 = vld [vmem:[%s3 + $0x34] sm:$0xf]
  %v60 = vld [vmem:[%s3 + $0x38] sm:$0xf]
  %v61 = vld [vmem:[%s3 + $0x3c] sm:$0xf]
  %v78 = vunpack.c.l.b16 %v46
  %v79 = vunpack.c.l.b16 %v47
  %v80 = vunpack.c.l.b16 %v48
  %v81 = vunpack.c.l.b16 %v49
  %v82 = vunpack.c.l.b16 %v50
  %v83 = vunpack.c.l.b16 %v51
  %v84 = vunpack.c.l.b16 %v52
  %v85 = vunpack.c.l.b16 %v53
  %v86 = vunpack.c.l.b16 %v54
  %v87 = vunpack.c.l.b16 %v55
  %v88 = vunpack.c.l.b16 %v56
  %v89 = vunpack.c.l.b16 %v57
  %v90 = vunpack.c.l.b16 %v58
  %v91 = vunpack.c.l.b16 %v59
  %v92 = vunpack.c.l.b16 %v60
  %v93 = vunpack.c.l.b16 %v61
  %v94 = vpack.c.b16 %v79, %v78
  %v95 = vpack.c.b16 %v81, %v80
  %v96 = vpack.c.b16 %v83, %v82
  %v97 = vpack.c.b16 %v85, %v84
  %v98 = vpack.c.b16 %v87, %v86
  %v99 = vpack.c.b16 %v89, %v88
  %v100 = vpack.c.b16 %v91, %v90
  %v101 = vpack.c.b16 %v93, %v92
  %110 = vmatpush.bf16.msra.mxu0 %v101
  %111 = vmatpush.bf16.msra.mxu0 %v100
  %112 = vmatpush.bf16.msra.mxu0 %v99
  %113 = vmatpush.bf16.msra.mxu0 %v98
  %114 = vmatpush.bf16.msra.mxu0 %v97
  %115 = vmatpush.bf16.msra.mxu0 %v96
  %116 = vmatpush.bf16.msra.mxu0 %v95
  %117 = vmatpush.bf16.msra.mxu0 %v94
  %118 = vmatmul.bf16.gmra.mxu0 %v45
  %v119 = vpop.f32.mrf.mxu0
  %v120 = vadd.f32 0.0, %v119
  %v121 = vpop.f32.mrf.mxu0
  %122 = vdwg.mxu0
  %v139 = vunpack.c.l.b16 %v28
  %v140 = vunpack.c.l.b16 %v29
  %v141 = vunpack.c.l.b16 %v30
  %v142 = vunpack.c.l.b16 %v31
  %v143 = vunpack.c.l.b16 %v32
  %v144 = vunpack.c.l.b16 %v33
  %v145 = vunpack.c.l.b16 %v34
  %v146 = vunpack.c.l.b16 %v35
  %v147 = vunpack.c.l.b16 %v36
  %v148 = vunpack.c.l.b16 %v37
  %v149 = vunpack.c.l.b16 %v38
  %v150 = vunpack.c.l.b16 %v39
  %v151 = vunpack.c.l.b16 %v40
  %v152 = vunpack.c.l.b16 %v41
  %v153 = vunpack.c.l.b16 %v42
  %v154 = vunpack.c.l.b16 %v43
  %v155 = vpack.c.b16 %v140, %v139
  %v156 = vpack.c.b16 %v142, %v141
  %v157 = vpack.c.b16 %v144, %v143
  %v158 = vpack.c.b16 %v146, %v145
  %v159 = vpack.c.b16 %v148, %v147
  %v160 = vpack.c.b16 %v150, %v149
  %v161 = vpack.c.b16 %v152, %v151
  %v162 = vpack.c.b16 %v154, %v153
  %171 = vmatpush.bf16.msra.mxu0 %v162
  %172 = vmatpush.bf16.msra.mxu0 %v161
  %173 = vmatpush.bf16.msra.mxu0 %v160
  %174 = vmatpush.bf16.msra.mxu0 %v159
  %175 = vmatpush.bf16.msra.mxu0 %v158
  %176 = vmatpush.bf16.msra.mxu0 %v157
  %177 = vmatpush.bf16.msra.mxu0 %v156
  %178 = vmatpush.bf16.msra.mxu0 %v155
  %179 = vmatmul.bf16.gmra.mxu0 %v27
  %v180 = vpop.f32.mrf.mxu0
  %v181 = vadd.f32 %v120, %v180
  %v182 = vpop.f32.mrf.mxu0
  %183 = vdwg.mxu0
  %v184 = vld [vmem:[%s4] sm:$0x1]
  %v186 = vperm.slane %v184, 0
  %v188 = vadd.f32 %v181, %v186
  %v189 = vmax.f32 %v188, 0.0
  %v190 = vpack.c.bf16 %v189, %v189
  %v191 = vld [vmem:[%s5] sm:$0xf]
  %v192 = vld [vmem:[%s5 + $0x4] sm:$0xf]
  %v193 = vld [vmem:[%s5 + $0x8] sm:$0xf]
  %v194 = vld [vmem:[%s5 + $0xc] sm:$0xf]
  %v195 = vld [vmem:[%s5 + $0x10] sm:$0xf]
  %v196 = vld [vmem:[%s5 + $0x14] sm:$0xf]
  %v197 = vld [vmem:[%s5 + $0x18] sm:$0xf]
  %v198 = vld [vmem:[%s5 + $0x1c] sm:$0xf]
  %v199 = vld [vmem:[%s5 + $0x20] sm:$0xf]
  %v200 = vld [vmem:[%s5 + $0x24] sm:$0xf]
  %v201 = vld [vmem:[%s5 + $0x28] sm:$0xf]
  %v202 = vld [vmem:[%s5 + $0x2c] sm:$0xf]
  %v203 = vld [vmem:[%s5 + $0x30] sm:$0xf]
  %v204 = vld [vmem:[%s5 + $0x34] sm:$0xf]
  %v205 = vld [vmem:[%s5 + $0x38] sm:$0xf]
  %v206 = vld [vmem:[%s5 + $0x3c] sm:$0xf]
  %v207 = vld [vmem:[%s6] sm:$0x1]
  %v209 = vperm.slane %v207, 0
  %v227 = vunpack.c.l.b16 %v191
  %v228 = vunpack.c.l.b16 %v192
  %v229 = vunpack.c.l.b16 %v193
  %v230 = vunpack.c.l.b16 %v194
  %v231 = vunpack.c.l.b16 %v195
  %v232 = vunpack.c.l.b16 %v196
  %v233 = vunpack.c.l.b16 %v197
  %v234 = vunpack.c.l.b16 %v198
  %v235 = vunpack.c.l.b16 %v199
  %v236 = vunpack.c.l.b16 %v200
  %v237 = vunpack.c.l.b16 %v201
  %v238 = vunpack.c.l.b16 %v202
  %v239 = vunpack.c.l.b16 %v203
  %v240 = vunpack.c.l.b16 %v204
  %v241 = vunpack.c.l.b16 %v205
  %v242 = vunpack.c.l.b16 %v206
  %v243 = vpack.c.b16 %v228, %v227
  %v244 = vpack.c.b16 %v230, %v229
  %v245 = vpack.c.b16 %v232, %v231
  %v246 = vpack.c.b16 %v234, %v233
  %v247 = vpack.c.b16 %v236, %v235
  %v248 = vpack.c.b16 %v238, %v237
  %v249 = vpack.c.b16 %v240, %v239
  %v250 = vpack.c.b16 %v242, %v241
  %259 = vmatpush.bf16.msra.mxu0 %v250
  %260 = vmatpush.bf16.msra.mxu0 %v249
  %261 = vmatpush.bf16.msra.mxu0 %v248
  %262 = vmatpush.bf16.msra.mxu0 %v247
  %263 = vmatpush.bf16.msra.mxu0 %v246
  %264 = vmatpush.bf16.msra.mxu0 %v245
  %265 = vmatpush.bf16.msra.mxu0 %v244
  %266 = vmatpush.bf16.msra.mxu0 %v243
  %267 = vmatmul.bf16.gmra.mxu0 %v190
  %v268 = vpop.f32.mrf.mxu0
  %v269 = vadd.f32 %v209, %v268
  %v270 = vpop.f32.mrf.mxu0
  %271 = vdwg.mxu0
  %v272 = vmax.f32 %v269, 0.0
  %273 = vst [vmem:[%s7] sm:$0xff] %v272
  // Predicated region
  $region30: #{superb_xvector_forward.3} parent=0 // pred_check
    _
  $region31: #{superb_xvector_forward.3} parent=0 // pred_check_branch
    %275 = sbr.rel (0) target = $region33
  $region32: #{superb_xvector_forward.3} parent=0 // pred_region
    _
  $region33: #{superb_xvector_forward.3} parent=0 // pred_fallthru
    _
  // Predicated region
  $region34: #{superb_xvector_forward.3} parent=0 // pred_check
    _
  $region35: #{superb_xvector_forward.3} parent=0 // pred_check_branch
    %277 = sbr.rel (0) target = $region37
  $region36: #{superb_xvector_forward.3} parent=0 // pred_region
    _
  $region37: #{superb_xvector_forward.3} parent=0 // pred_fallthru
    _

// kernel: superb_xvector_forward.2
$region0: #{superb_xvector_forward.2}
  #allocation0 [shape = 'u32[]', space=smem, size = 0x4, offset = 0x4, fixed_abs, tag = 'smem constant byte address 0x4 - core index']
  #allocation1 [shape = 'u32[72,128]{1,0:T(1,128)}', space=vmem, size = 0x9000, scoped, tag = 'internal scratch']
  #allocation2 [shape = 's32[1]{0}', space=sflag, size = 0x4, scoped, tag = 'scoped memory for superb_xvector_forward.2']
  #allocation3 [shape = 'u8[512]{0}', space=smem, size = 0x200, scoped, tag = 'prefetched SMEM operand 0']
  %s0 = inlined_call_operand.hbm [shape: s32[2], index: 0, kind: input, shape index: {}]
  %s1 = inlined_call_operand.vmem [shape: bf16[2,24,128], index: 1, kind: input, shape index: {}]
  %s2 = inlined_call_operand.hbm [shape: bf16[128,128], index: 2, kind: input, shape index: {}]
  %s3 = inlined_call_operand.hbm [shape: f32[1,128], index: 3, kind: input, shape index: {}]
  %s4 = inlined_call_operand.hbm [shape: bf16[5,128,128], index: 4, kind: input, shape index: {}]
  %s5 = inlined_call_operand.hbm [shape: f32[1,128], index: 5, kind: input, shape index: {}]
  %s6 = inlined_call_operand.hbm [shape: bf16[3,128,128], index: 6, kind: input, shape index: {}]
  %s7 = inlined_call_operand.vmem [shape: f32[1,128], index: 7, kind: input, shape index: {}]
  %s8 = inlined_call_operand.hbm [shape: bf16[3,128,128], index: 8, kind: input, shape index: {}]
  %s9 = inlined_call_operand.vmem [shape: f32[1,128], index: 9, kind: input, shape index: {}]
  %s10 = inlined_call_operand.vmem [shape: bf16[1,128,128], index: 10, kind: input, shape index: {}]
  %s11 = inlined_call_operand.vmem [shape: f32[1,128], index: 11, kind: input, shape index: {}]
  %s12 = inlined_call_operand.vmem [shape: bf16[1,128,128], index: 12, kind: input, shape index: {}]
  %s13 = inlined_call_operand.vmem [shape: f32[1,128], index: 13, kind: input, shape index: {}]
  %s14 = inlined_call_operand.vmem [shape: f32[2,1,128], index: 14, kind: output, shape index: {0}]
  %s15 = inlined_call_operand.vmem [shape: f32[2,1,128], index: 15, kind: output, shape index: {1}]
  %16 = xla_tuple %s14, %s15
  %s17 = sld [smem:[#allocation0]]
  $region117: #{superb_xvector_forward.2} parent=0
    _
  %s19 = ssub.s32 1, %s17
  %s20 = scalar_select 0, %s19, %s17
  %s22 = sshll.u32 %s0, 4
  %s23 = int_to_ptr.hbm [resolvable:$true] %s22
  %25 = dma.hbm_to_smem %s23, 16, [#allocation3], [#allocation2]
  %27 = dma.done [#allocation2], 16
  %28 = sfence
  $region1: #{superb_xvector_forward.2} parent=0
    #allocation4 [shape = 'u8[32768]{0}', space=vmem, size = 0x8000, scoped, tag = 'input window, operand 2, single buffered']
    #allocation5 [shape = 's32[2]{0}', space=sflag, size = 0x8, scoped, tag = 'scoped memory for superb_xvector_forward.2']
    #allocation6 [shape = 'u8[512]{0}', space=vmem, size = 0x400, scoped, tag = 'input window, operand 3, single buffered']
    #allocation7 [shape = 's32[1]{0}', space=sflag, size = 0x4, scoped, tag = 'scoped memory for superb_xvector_forward.2']
    #allocation8 [shape = 'u8[163840]{0}', space=vmem, size = 0x28000, scoped, tag = 'input window, operand 4, single buffered']
    #allocation9 [shape = 'u8[512]{0}', space=vmem, size = 0x400, scoped, tag = 'input window, operand 5, single buffered']
    #allocation10 [shape = 's32[1]{0}', space=sflag, size = 0x4, scoped, tag = 'scoped memory for superb_xvector_forward.2']
    #allocation11 [shape = 'u8[98304]{0}', space=vmem, size = 0x18000, scoped, tag = 'input window, operand 6, single buffered']
    #allocation12 [shape = 'u8[98304]{0}', space=vmem, size = 0x18000, scoped, tag = 'input window, operand 8, single buffered']
    #allocation13 [shape = 's32[1]{0}', space=sflag, size = 0x4, scoped, tag = 'scoped memory for superb_xvector_forward.2']
    %29 = vsyncpa [#allocation5], 0
    %30 = vsyncpa [#allocation7], 0
    %31 = vsyncpa [#allocation10], 0
    %32 = vsyncpa [#allocation13], 0
    loop: start=0, step=1, limit=4
    $region2: #{superb_xvector_forward.2} parent=1 // loop_pre_header
      _
    $region3: #{superb_xvector_forward.2} parent=1 // loop_header
      %s34 = sphi 0, %s38
      %p35 = scmp.ge.s32.totalorder %s34, 4
      %s44 = sphi 0, %s46
      %s47 = sphi 0, %s44
      %s48 = sphi 0, %s47
      %s64 = sphi 0, %s48
      %s68 = sphi 0, %s68
      %s70 = sphi 0, %s68
      %s71 = sphi 0, %s70
      %s85 = sphi 0, %s71
      %s89 = sphi 0, %s89
      %s91 = sphi 0, %s89
      %s92 = sphi 0, %s91
      %s106 = sphi 0, %s92
      %s110 = sphi 0, %s110
      %s112 = sphi 0, %s110
      %s113 = sphi 0, %s112
      %s127 = sphi 0, %s113
      %s131 = sphi 0, %s131
      %s133 = sphi 0, %s131
      %s134 = sphi 0, %s133
      %s148 = sphi 0, %s134
      %s152 = sphi 0, %s152
      %s154 = sphi 0, %s152
      %s155 = sphi 0, %s154
      %s169 = sphi 0, %s155
      %s173 = sphi 0, %s173
      %s175 = sphi 0, %s173
      %s176 = sphi 0, %s175
      %s190 = sphi 0, %s176
      %s194 = sphi 0, %s194
      %s196 = sphi 0, %s194
      %s197 = sphi 0, %s196
      %s211 = sphi 0, %s197
      %s215 = sphi 0, %s215
      %s217 = sphi 0, %s215
      %s218 = sphi 0, %s217
      %s232 = sphi 0, %s218
      %s236 = sphi 0, %s236
      %s238 = sphi 0, %s236
      %s239 = sphi 0, %s238
      %s253 = sphi 0, %s239
      %s257 = sphi 0, %s257
      %s259 = sphi 0, %s257
      %s260 = sphi 0, %s259
      %s274 = sphi 0, %s260
      %s278 = sphi 0, %s278
      %s280 = sphi 0, %s278
      %s281 = sphi 0, %s280
      %s295 = sphi 0, %s281
      %s299 = sphi 0, %s299
      %s301 = sphi 0, %s299
      %s302 = sphi 0, %s301
      %s316 = sphi 0, %s302
      %s322 = sphi 0, %s324
      %s325 = sphi 0, %s322
      %s326 = sphi 0, %s325
      %s342 = sphi 0, %s326
      %s348 = sphi 0, %s350
      %s351 = sphi 0, %s348
      %s352 = sphi 0, %s351
      %s368 = sphi 0, %s352
    $region4: #{superb_xvector_forward.2} parent=1 // loop_header_branch
      %37 = sbr.rel (%p35) target = $region8
    $region5: #{superb_xvector_forward.2} parent=1 // loop_body
      %s39 = ssub.s32 %s34, 1
      %s40 = ssub.s32 %s34, 2
      %s41 = sadd.s32 %s34, 1
      %s42 = ssub.s32 %s34, %s41
      %p43 = scmp.eq.s32.totalorder %s42, 0
      %s45 = sadd.s32 %s44, 1
      %s46 = scalar_select %p43, %s44, %s45
      %p49 = pneg %p43
      %p50 = scmp.eq.s32.totalorder %s34, 1
      %p51 = por %p49, %p50
      %p52 = scmp.ne.s32.totalorder %s44, %s47
      %p53 = scmp.eq.s32.totalorder %s34, 0
      %p54 = por %p52, %p53
      %p55 = scmp.ne.s32.totalorder %s44, %s47
      %p56 = scmp.eq.s32.totalorder %s39, 1
      %p57 = por %p55, %p56
      %p58 = scmp.ne.s32.totalorder %s47, %s48
      %p59 = scmp.eq.s32.totalorder %s39, 0
      %p60 = por %p58, %p59
      %p61 = scmp.ne.s32.totalorder %s47, %s48
      %p62 = scmp.eq.s32.totalorder %s40, 1
      %p63 = por %p61, %p62
      %p65 = scmp.ne.s32.totalorder %s48, %s64
      %p66 = scmp.eq.s32.totalorder %s40, 0
      %p67 = por %p65, %p66
      %s69 = sadd.s32 %s68, 1
      %p72 = scmp.eq.s32.totalorder %s34, 1
      %p73 = scmp.ne.s32.totalorder %s68, %s70
      %p74 = scmp.eq.s32.totalorder %s34, 0
      %p75 = por %p73, %p74
      %p76 = scmp.ne.s32.totalorder %s68, %s70
      %p77 = scmp.eq.s32.totalorder %s39, 1
      %p78 = por %p76, %p77
      %p79 = scmp.ne.s32.totalorder %s70, %s71
      %p80 = scmp.eq.s32.totalorder %s39, 0
      %p81 = por %p79, %p80
      %p82 = scmp.ne.s32.totalorder %s70, %s71
      %p83 = scmp.eq.s32.totalorder %s40, 1
      %p84 = por %p82, %p83
      %p86 = scmp.ne.s32.totalorder %s71, %s85
      %p87 = scmp.eq.s32.totalorder %s40, 0
      %p88 = por %p86, %p87
      %s90 = sadd.s32 %s89, 1
      %p93 = scmp.eq.s32.totalorder %s34, 1
      %p94 = scmp.ne.s32.totalorder %s89, %s91
      %p95 = scmp.eq.s32.totalorder %s34, 0
      %p96 = por %p94, %p95
      %p97 = scmp.ne.s32.totalorder %s89, %s91
      %p98 = scmp.eq.s32.totalorder %s39, 1
      %p99 = por %p97, %p98
      %p100 = scmp.ne.s32.totalorder %s91, %s92
      %p101 = scmp.eq.s32.totalorder %s39, 0
      %p102 = por %p100, %p101
      %p103 = scmp.ne.s32.totalorder %s91, %s92
      %p104 = scmp.eq.s32.totalorder %s40, 1
      %p105 = por %p103, %p104
      %p107 = scmp.ne.s32.totalorder %s92, %s106
      %p108 = scmp.eq.s32.totalorder %s40, 0
      %p109 = por %p107, %p108
      %s111 = sadd.s32 %s110, 1
      %p114 = scmp.eq.s32.totalorder %s34, 1
      %p115 = scmp.ne.s32.totalorder %s110, %s112
      %p116 = scmp.eq.s32.totalorder %s34, 0
      %p117 = por %p115, %p116
      %p118 = scmp.ne.s32.totalorder %s110, %s112
      %p119 = scmp.eq.s32.totalorder %s39, 1
      %p120 = por %p118, %p119
      %p121 = scmp.ne.s32.totalorder %s112, %s113
      %p122 = scmp.eq.s32.totalorder %s39, 0
      %p123 = por %p121, %p122
      %p124 = scmp.ne.s32.totalorder %s112, %s113
      %p125 = scmp.eq.s32.totalorder %s40, 1
      %p126 = por %p124, %p125
      %p128 = scmp.ne.s32.totalorder %s113, %s127
      %p129 = scmp.eq.s32.totalorder %s40, 0
      %p130 = por %p128, %p129
      %s132 = sadd.s32 %s131, 1
      %p135 = scmp.eq.s32.totalorder %s34, 1
      %p136 = scmp.ne.s32.totalorder %s131, %s133
      %p137 = scmp.eq.s32.totalorder %s34, 0
      %p138 = por %p136, %p137
      %p139 = scmp.ne.s32.totalorder %s131, %s133
      %p140 = scmp.eq.s32.totalorder %s39, 1
      %p141 = por %p139, %p140
      %p142 = scmp.ne.s32.totalorder %s133, %s134
      %p143 = scmp.eq.s32.totalorder %s39, 0
      %p144 = por %p142, %p143
      %p145 = scmp.ne.s32.totalorder %s133, %s134
      %p146 = scmp.eq.s32.totalorder %s40, 1
      %p147 = por %p145, %p146
      %p149 = scmp.ne.s32.totalorder %s134, %s148
      %p150 = scmp.eq.s32.totalorder %s40, 0
      %p151 = por %p149, %p150
      %s153 = sadd.s32 %s152, 1
      %p156 = scmp.eq.s32.totalorder %s34, 1
      %p157 = scmp.ne.s32.totalorder %s152, %s154
      %p158 = scmp.eq.s32.totalorder %s34, 0
      %p159 = por %p157, %p158
      %p160 = scmp.ne.s32.totalorder %s152, %s154
      %p161 = scmp.eq.s32.totalorder %s39, 1
      %p162 = por %p160, %p161
      %p163 = scmp.ne.s32.totalorder %s154, %s155
      %p164 = scmp.eq.s32.totalorder %s39, 0
      %p165 = por %p163, %p164
      %p166 = scmp.ne.s32.totalorder %s154, %s155
      %p167 = scmp.eq.s32.totalorder %s40, 1
      %p168 = por %p166, %p167
      %p170 = scmp.ne.s32.totalorder %s155, %s169
      %p171 = scmp.eq.s32.totalorder %s40, 0
      %p172 = por %p170, %p171
      %s174 = sadd.s32 %s173, 1
      %p177 = scmp.eq.s32.totalorder %s34, 1
      %p178 = scmp.ne.s32.totalorder %s173, %s175
      %p179 = scmp.eq.s32.totalorder %s34, 0
      %p180 = por %p178, %p179
      %p181 = scmp.ne.s32.totalorder %s173, %s175
      %p182 = scmp.eq.s32.totalorder %s39, 1
      %p183 = por %p181, %p182
      %p184 = scmp.ne.s32.totalorder %s175, %s176
      %p185 = scmp.eq.s32.totalorder %s39, 0
      %p186 = por %p184, %p185
      %p187 = scmp.ne.s32.totalorder %s175, %s176
      %p188 = scmp.eq.s32.totalorder %s40, 1
      %p189 = por %p187, %p188
      %p191 = scmp.ne.s32.totalorder %s176, %s190
      %p192 = scmp.eq.s32.totalorder %s40, 0
      %p193 = por %p191, %p192
      %s195 = sadd.s32 %s194, 1
      %p198 = scmp.eq.s32.totalorder %s34, 1
      %p199 = scmp.ne.s32.totalorder %s194, %s196
      %p200 = scmp.eq.s32.totalorder %s34, 0
      %p201 = por %p199, %p200
      %p202 = scmp.ne.s32.totalorder %s194, %s196
      %p203 = scmp.eq.s32.totalorder %s39, 1
      %p204 = por %p202, %p203
      %p205 = scmp.ne.s32.totalorder %s196, %s197
      %p206 = scmp.eq.s32.totalorder %s39, 0
      %p207 = por %p205, %p206
      %p208 = scmp.ne.s32.totalorder %s196, %s197
      %p209 = scmp.eq.s32.totalorder %s40, 1
      %p210 = por %p208, %p209
      %p212 = scmp.ne.s32.totalorder %s197, %s211
      %p213 = scmp.eq.s32.totalorder %s40, 0
      %p214 = por %p212, %p213
      %s216 = sadd.s32 %s215, 1
      %p219 = scmp.eq.s32.totalorder %s34, 1
      %p220 = scmp.ne.s32.totalorder %s215, %s217
      %p221 = scmp.eq.s32.totalorder %s34, 0
      %p222 = por %p220, %p221
      %p223 = scmp.ne.s32.totalorder %s215, %s217
      %p224 = scmp.eq.s32.totalorder %s39, 1
      %p225 = por %p223, %p224
      %p226 = scmp.ne.s32.totalorder %s217, %s218
      %p227 = scmp.eq.s32.totalorder %s39, 0
      %p228 = por %p226, %p227
      %p229 = scmp.ne.s32.totalorder %s217, %s218
      %p230 = scmp.eq.s32.totalorder %s40, 1
      %p231 = por %p229, %p230
      %p233 = scmp.ne.s32.totalorder %s218, %s232
      %p234 = scmp.eq.s32.totalorder %s40, 0
      %p235 = por %p233, %p234
      %s237 = sadd.s32 %s236, 1
      %p240 = scmp.eq.s32.totalorder %s34, 1
      %p241 = scmp.ne.s32.totalorder %s236, %s238
      %p242 = scmp.eq.s32.totalorder %s34, 0
      %p243 = por %p241, %p242
      %p244 = scmp.ne.s32.totalorder %s236, %s238
      %p245 = scmp.eq.s32.totalorder %s39, 1
      %p246 = por %p244, %p245
      %p247 = scmp.ne.s32.totalorder %s238, %s239
      %p248 = scmp.eq.s32.totalorder %s39, 0
      %p249 = por %p247, %p248
      %p250 = scmp.ne.s32.totalorder %s238, %s239
      %p251 = scmp.eq.s32.totalorder %s40, 1
      %p252 = por %p250, %p251
      %p254 = scmp.ne.s32.totalorder %s239, %s253
      %p255 = scmp.eq.s32.totalorder %s40, 0
      %p256 = por %p254, %p255
      %s258 = sadd.s32 %s257, 1
      %p261 = scmp.eq.s32.totalorder %s34, 1
      %p262 = scmp.ne.s32.totalorder %s257, %s259
      %p263 = scmp.eq.s32.totalorder %s34, 0
      %p264 = por %p262, %p263
      %p265 = scmp.ne.s32.totalorder %s257, %s259
      %p266 = scmp.eq.s32.totalorder %s39, 1
      %p267 = por %p265, %p266
      %p268 = scmp.ne.s32.totalorder %s259, %s260
      %p269 = scmp.eq.s32.totalorder %s39, 0
      %p270 = por %p268, %p269
      %p271 = scmp.ne.s32.totalorder %s259, %s260
      %p272 = scmp.eq.s32.totalorder %s40, 1
      %p273 = por %p271, %p272
      %p275 = scmp.ne.s32.totalorder %s260, %s274
      %p276 = scmp.eq.s32.totalorder %s40, 0
      %p277 = por %p275, %p276
      %s279 = sadd.s32 %s278, 1
      %p282 = scmp.eq.s32.totalorder %s34, 1
      %p283 = scmp.ne.s32.totalorder %s278, %s280
      %p284 = scmp.eq.s32.totalorder %s34, 0
      %p285 = por %p283, %p284
      %p286 = scmp.ne.s32.totalorder %s278, %s280
      %p287 = scmp.eq.s32.totalorder %s39, 1
      %p288 = por %p286, %p287
      %p289 = scmp.ne.s32.totalorder %s280, %s281
      %p290 = scmp.eq.s32.totalorder %s39, 0
      %p291 = por %p289, %p290
      %p292 = scmp.ne.s32.totalorder %s280, %s281
      %p293 = scmp.eq.s32.totalorder %s40, 1
      %p294 = por %p292, %p293
      %p296 = scmp.ne.s32.totalorder %s281, %s295
      %p297 = scmp.eq.s32.totalorder %s40, 0
      %p298 = por %p296, %p297
      %s300 = sadd.s32 %s299, 1
      %p303 = scmp.eq.s32.totalorder %s34, 1
      %p304 = scmp.ne.s32.totalorder %s299, %s301
      %p305 = scmp.eq.s32.totalorder %s34, 0
      %p306 = por %p304, %p305
      %p307 = scmp.ne.s32.totalorder %s299, %s301
      %p308 = scmp.eq.s32.totalorder %s39, 1
      %p309 = por %p307, %p308
      %p310 = scmp.ne.s32.totalorder %s301, %s302
      %p311 = scmp.eq.s32.totalorder %s39, 0
      %p312 = por %p310, %p311
      %p313 = scmp.ne.s32.totalorder %s301, %s302
      %p314 = scmp.eq.s32.totalorder %s40, 1
      %p315 = por %p313, %p314
      %p317 = scmp.ne.s32.totalorder %s302, %s316
      %p318 = scmp.eq.s32.totalorder %s40, 0
      %p319 = por %p317, %p318
      %s320 = ssub.s32 %s34, %s41
      %p321 = scmp.eq.s32.totalorder %s320, 0
      %s323 = sadd.s32 %s322, 1
      %s324 = scalar_select %p321, %s322, %s323
      %p327 = pneg %p321
      %p328 = scmp.eq.s32.totalorder %s34, 1
      %p329 = por %p327, %p328
      %p330 = scmp.ne.s32.totalorder %s322, %s325
      %p331 = scmp.eq.s32.totalorder %s34, 0
      %p332 = por %p330, %p331
      %p333 = scmp.ne.s32.totalorder %s322, %s325
      %p334 = scmp.eq.s32.totalorder %s39, 1
      %p335 = por %p333, %p334
      %p336 = scmp.ne.s32.totalorder %s325, %s326
      %p337 = scmp.eq.s32.totalorder %s39, 0
      %p338 = por %p336, %p337
      %p339 = scmp.ne.s32.totalorder %s325, %s326
      %p340 = scmp.eq.s32.totalorder %s40, 1
      %p341 = por %p339, %p340
      %p343 = scmp.ne.s32.totalorder %s326, %s342
      %p344 = scmp.eq.s32.totalorder %s40, 0
      %p345 = por %p343, %p344
      %s346 = ssub.s32 %s34, %s41
      %p347 = scmp.eq.s32.totalorder %s346, 0
      %s349 = sadd.s32 %s348, 1
      %s350 = scalar_select %p347, %s348, %s349
      %p353 = pneg %p347
      %p354 = scmp.eq.s32.totalorder %s34, 1
      %p355 = por %p353, %p354
      %p356 = scmp.ne.s32.totalorder %s348, %s351
      %p357 = scmp.eq.s32.totalorder %s34, 0
      %p358 = por %p356, %p357
      %p359 = scmp.ne.s32.totalorder %s348, %s351
      %p360 = scmp.eq.s32.totalorder %s39, 1
      %p361 = por %p359, %p360
      %p362 = scmp.ne.s32.totalorder %s351, %s352
      %p363 = scmp.eq.s32.totalorder %s39, 0
      %p364 = por %p362, %p363
      %p365 = scmp.ne.s32.totalorder %s351, %s352
      %p366 = scmp.eq.s32.totalorder %s40, 1
      %p367 = por %p365, %p366
      %p369 = scmp.ne.s32.totalorder %s352, %s368
      %p370 = scmp.eq.s32.totalorder %s40, 0
      %p371 = por %p369, %p370
      %p372 = scmp.le.s32.totalorder 1, %s34
      %p373 = scmp.lt.s32.totalorder %s34, 3
      %p374 = pnand %p372, %p373
      %p375 = pneg %p374
      // Predicated region
      $region9: #{superb_xvector_forward.2} parent=5 // pred_check
        _
      $region10: #{superb_xvector_forward.2} parent=5 // pred_check_branch
        %377 = sbr.rel (%p374) target = $region12
      $region11: #{superb_xvector_forward.2} parent=5 // pred_region
        %s378 = ssub.s32 %s34, 1
        // Predicated region
        $region13: #{superb_xvector_forward.2} parent=11 // pred_check
          %p379 = pneg %p81
        $region14: #{superb_xvector_forward.2} parent=11 // pred_check_branch
          %381 = sbr.rel (%p379) target = $region16
        $region15: #{superb_xvector_forward.2} parent=11 // pred_region
          %383 = vsyncadd [#allocation5], 0
          %s384 = sshll.u32 %s2, 4
          %s385 = int_to_ptr.hbm [resolvable:$true] %s384
          %s386 = sshll.u32 [#allocation4], 4
          %s387 = int_to_ptr.vmem [resolvable:$true] %s386
          %392 = dma.hbm_to_vmem [thread:$0]  %s385, 1024, %s387, [#allocation5], 64, 64, 4
        $region16: #{superb_xvector_forward.2} parent=11 // pred_fallthru
          _
        // Predicated region
        $region17: #{superb_xvector_forward.2} parent=11 // pred_check
          %p393 = pneg %p102
        $region18: #{superb_xvector_forward.2} parent=11 // pred_check_branch
          %395 = sbr.rel (%p393) target = $region20
        $region19: #{superb_xvector_forward.2} parent=11 // pred_region
          %397 = vsyncadd [#allocation7], 0
          %s399 = sshll.u32 %s3, 4
          %s400 = int_to_ptr.hbm [resolvable:$true] %s399
          %s401 = sshll.u32 [#allocation6], 4
          %s402 = int_to_ptr.vmem [resolvable:$true] %s401
          %404 = dma.hbm_to_vmem [thread:$0]  %s400, 16, %s402, [#allocation7]
        $region20: #{superb_xvector_forward.2} parent=11 // pred_fallthru
          _
        // Predicated region
        $region21: #{superb_xvector_forward.2} parent=11 // pred_check
          %p405 = pneg %p123
        $region22: #{superb_xvector_forward.2} parent=11 // pred_check_branch
          %407 = sbr.rel (%p405) target = $region24
        $region23: #{superb_xvector_forward.2} parent=11 // pred_region
          %409 = vsyncadd [#allocation7], 0
          %s410 = sshll.u32 %s4, 4
          %s411 = int_to_ptr.hbm [resolvable:$true] %s410
          %s412 = sshll.u32 [#allocation8], 4
          %s413 = int_to_ptr.vmem [resolvable:$true] %s412
          %418 = dma.hbm_to_vmem [thread:$0]  %s411, 5120, %s413, [#allocation7], 64, 64, 4
        $region24: #{superb_xvector_forward.2} parent=11 // pred_fallthru
          _
        // Predicated region
        $region25: #{superb_xvector_forward.2} parent=11 // pred_check
          %p419 = pneg %p144
        $region26: #{superb_xvector_forward.2} parent=11 // pred_check_branch
          %421 = sbr.rel (%p419) target = $region28
        $region27: #{superb_xvector_forward.2} parent=11 // pred_region
          %423 = vsyncadd [#allocation10], 0
          %s425 = sshll.u32 %s5, 4
          %s426 = int_to_ptr.hbm [resolvable:$true] %s425
          %s427 = sshll.u32 [#allocation9], 4
          %s428 = int_to_ptr.vmem [resolvable:$true] %s427
          %430 = dma.hbm_to_vmem [thread:$0]  %s426, 16, %s428, [#allocation10]
        $region28: #{superb_xvector_forward.2} parent=11 // pred_fallthru
          _
        // Predicated region
        $region29: #{superb_xvector_forward.2} parent=11 // pred_check
          %p431 = pneg %p165
        $region30: #{superb_xvector_forward.2} parent=11 // pred_check_branch
          %433 = sbr.rel (%p431) target = $region32
        $region31: #{superb_xvector_forward.2} parent=11 // pred_region
          %435 = vsyncadd [#allocation10], 0
          %s436 = sshll.u32 %s6, 4
          %s437 = int_to_ptr.hbm [resolvable:$true] %s436
          %s438 = sshll.u32 [#allocation11], 4
          %s439 = int_to_ptr.vmem [resolvable:$true] %s438
          %444 = dma.hbm_to_vmem [thread:$0]  %s437, 3072, %s439, [#allocation10], 64, 64, 4
        $region32: #{superb_xvector_forward.2} parent=11 // pred_fallthru
          _
        // Predicated region
        $region33: #{superb_xvector_forward.2} parent=11 // pred_check
          %p445 = pneg %p186
        $region34: #{superb_xvector_forward.2} parent=11 // pred_check_branch
          %447 = sbr.rel (%p445) target = $region36
        $region35: #{superb_xvector_forward.2} parent=11 // pred_region
          _
        $region36: #{superb_xvector_forward.2} parent=11 // pred_fallthru
          _
        // Predicated region
        $region37: #{superb_xvector_forward.2} parent=11 // pred_check
          %p448 = pneg %p207
        $region38: #{superb_xvector_forward.2} parent=11 // pred_check_branch
          %450 = sbr.rel (%p448) target = $region40
        $region39: #{superb_xvector_forward.2} parent=11 // pred_region
          %452 = vsyncadd [#allocation13], 0
          %s453 = sshll.u32 %s8, 4
          %s454 = int_to_ptr.hbm [resolvable:$true] %s453
          %s455 = sshll.u32 [#allocation12], 4
          %s456 = int_to_ptr.vmem [resolvable:$true] %s455
          %461 = dma.hbm_to_vmem [thread:$0]  %s454, 3072, %s456, [#allocation13], 64, 64, 4
        $region40: #{superb_xvector_forward.2} parent=11 // pred_fallthru
          _
        // Predicated region
        $region41: #{superb_xvector_forward.2} parent=11 // pred_check
          %p462 = pneg %p228
        $region42: #{superb_xvector_forward.2} parent=11 // pred_check_branch
          %464 = sbr.rel (%p462) target = $region44
        $region43: #{superb_xvector_forward.2} parent=11 // pred_region
          _
        $region44: #{superb_xvector_forward.2} parent=11 // pred_fallthru
          _
        // Predicated region
        $region45: #{superb_xvector_forward.2} parent=11 // pred_check
          %p465 = pneg %p249
        $region46: #{superb_xvector_forward.2} parent=11 // pred_check_branch
          %467 = sbr.rel (%p465) target = $region48
        $region47: #{superb_xvector_forward.2} parent=11 // pred_region
          _
        $region48: #{superb_xvector_forward.2} parent=11 // pred_fallthru
          _
        // Predicated region
        $region49: #{superb_xvector_forward.2} parent=11 // pred_check
          %p468 = pneg %p270
        $region50: #{superb_xvector_forward.2} parent=11 // pred_check_branch
          %470 = sbr.rel (%p468) target = $region52
        $region51: #{superb_xvector_forward.2} parent=11 // pred_region
          _
        $region52: #{superb_xvector_forward.2} parent=11 // pred_fallthru
          _
        // Predicated region
        $region53: #{superb_xvector_forward.2} parent=11 // pred_check
          %p471 = pneg %p291
        $region54: #{superb_xvector_forward.2} parent=11 // pred_check_branch
          %473 = sbr.rel (%p471) target = $region56
        $region55: #{superb_xvector_forward.2} parent=11 // pred_region
          _
        $region56: #{superb_xvector_forward.2} parent=11 // pred_fallthru
          _
        // Predicated region
        $region57: #{superb_xvector_forward.2} parent=11 // pred_check
          %p474 = pneg %p312
        $region58: #{superb_xvector_forward.2} parent=11 // pred_check_branch
          %476 = sbr.rel (%p474) target = $region60
        $region59: #{superb_xvector_forward.2} parent=11 // pred_region
          _
        $region60: #{superb_xvector_forward.2} parent=11 // pred_fallthru
          _
      $region12: #{superb_xvector_forward.2} parent=5 // pred_fallthru
        _
      %p477 = scmp.lt.s32.totalorder %s34, 2
      // Predicated region
      $region61: #{superb_xvector_forward.2} parent=5 // pred_check
        %p478 = pneg %p477
      $region62: #{superb_xvector_forward.2} parent=5 // pred_check_branch
        %480 = sbr.rel (%p478) target = $region64
      $region63: #{superb_xvector_forward.2} parent=5 // pred_region
        // Predicated region
        $region65: #{superb_xvector_forward.2} parent=63 // pred_check
          %p481 = pneg %p54
        $region66: #{superb_xvector_forward.2} parent=63 // pred_check_branch
          %483 = sbr.rel (%p481) target = $region68
        $region67: #{superb_xvector_forward.2} parent=63 // pred_region
          %p484 = scmp.lt.s32.totalorder %s34, 1
          %s485 = scalar_select %p484, %s34, 1
          %s486 = smul.addr %s485, 3
          %s487 = smul.addr %s486, 4
          %s488 = scalar_lea.vmem %s1, %s487
        $region68: #{superb_xvector_forward.2} parent=63 // pred_fallthru
          _
      $region64: #{superb_xvector_forward.2} parent=5 // pred_fallthru
        _
      %p489 = scmp.le.s32.totalorder 1, %s34
      %p490 = scmp.lt.s32.totalorder %s34, 3
      %p491 = pnand %p489, %p490
      %p492 = pneg %p491
      // Predicated region
      $region69: #{superb_xvector_forward.2} parent=5 // pred_check
        _
      $region70: #{superb_xvector_forward.2} parent=5 // pred_check_branch
        %494 = sbr.rel (%p491) target = $region72
      $region71: #{superb_xvector_forward.2} parent=5 // pred_region
        %s495 = ssub.s32 %s34, 1
        // Predicated region
        $region73: #{superb_xvector_forward.2} parent=71 // pred_check
          %p496 = pneg %p81
        $region74: #{superb_xvector_forward.2} parent=71 // pred_check_branch
          %498 = sbr.rel (%p496) target = $region76
        $region75: #{superb_xvector_forward.2} parent=71 // pred_region
          %500 = dma.done [#allocation5], 1024
        $region76: #{superb_xvector_forward.2} parent=71 // pred_fallthru
          _
        // Predicated region
        $region77: #{superb_xvector_forward.2} parent=71 // pred_check
          %p501 = pneg %p102
        $region78: #{superb_xvector_forward.2} parent=71 // pred_check_branch
          %503 = sbr.rel (%p501) target = $region80
        $region79: #{superb_xvector_forward.2} parent=71 // pred_region
          %505 = dma.done [#allocation7], 16
        $region80: #{superb_xvector_forward.2} parent=71 // pred_fallthru
          _
        // Predicated region
        $region81: #{superb_xvector_forward.2} parent=71 // pred_check
          %p506 = pneg %p123
        $region82: #{superb_xvector_forward.2} parent=71 // pred_check_branch
          %508 = sbr.rel (%p506) target = $region84
        $region83: #{superb_xvector_forward.2} parent=71 // pred_region
          %510 = dma.done [#allocation7], 5120
        $region84: #{superb_xvector_forward.2} parent=71 // pred_fallthru
          _
        // Predicated region
        $region85: #{superb_xvector_forward.2} parent=71 // pred_check
          %p511 = pneg %p144
        $region86: #{superb_xvector_forward.2} parent=71 // pred_check_branch
          %513 = sbr.rel (%p511) target = $region88
        $region87: #{superb_xvector_forward.2} parent=71 // pred_region
          %515 = dma.done [#allocation10], 16
        $region88: #{superb_xvector_forward.2} parent=71 // pred_fallthru
          _
        // Predicated region
        $region89: #{superb_xvector_forward.2} parent=71 // pred_check
          %p516 = pneg %p165
        $region90: #{superb_xvector_forward.2} parent=71 // pred_check_branch
          %518 = sbr.rel (%p516) target = $region92
        $region91: #{superb_xvector_forward.2} parent=71 // pred_region
          %520 = dma.done [#allocation10], 3072
        $region92: #{superb_xvector_forward.2} parent=71 // pred_fallthru
          _
        // Predicated region
        $region93: #{superb_xvector_forward.2} parent=71 // pred_check
          %p521 = pneg %p207
        $region94: #{superb_xvector_forward.2} parent=71 // pred_check_branch
          %523 = sbr.rel (%p521) target = $region96
        $region95: #{superb_xvector_forward.2} parent=71 // pred_region
          %525 = dma.done [#allocation13], 3072
        $region96: #{superb_xvector_forward.2} parent=71 // pred_fallthru
          _
        %p526 = scmp.lt.s32.totalorder %s39, 1
        %s527 = scalar_select %p526, %s39, 1
        %s528 = smul.addr %s527, 3
        %s529 = smul.addr %s528, 4
        %s530 = scalar_lea.vmem %s1, %s529
        %p531 = pneg %p60
        %p532 = pneg %p57
        %p533 = pneg %p81
        %p534 = pneg %p78
        %p535 = pneg %p102
        %p536 = pneg %p99
        %p537 = pneg %p123
        %p538 = pneg %p120
        %p539 = pneg %p144
        %p540 = pneg %p141
        %p541 = pneg %p165
        %p542 = pneg %p162
        %p543 = pneg %p186
        %p544 = pneg %p183
        %p545 = pneg %p207
        %p546 = pneg %p204
        %p547 = pneg %p228
        %p548 = pneg %p225
        %p549 = pneg %p249
        %p550 = pneg %p246
        %p551 = pneg %p270
        %p552 = pneg %p267
        %p553 = pneg %p291
        %p554 = pneg %p288
        %p555 = pneg %p312
        %p556 = pneg %p309
        %p557 = pneg %p338
        %p558 = pneg %p335
        %p559 = scmp.lt.s32.totalorder %s39, 1
        %s560 = scalar_select %p559, %s39, 1
        %s561 = scalar_lea.vmem %s14, %s560
        %p562 = pneg %p364
        %p563 = pneg %p361
        %p564 = scmp.lt.s32.totalorder %s39, 1
        %s565 = scalar_select %p564, %s39, 1
        %s566 = scalar_lea.vmem %s15, %s565
        %p567 = scmp.lt.s32.totalorder %s39, 1
        %s568 = scalar_select %p567, %s39, 1
        %s569 = smul.addr %s568, 3
        %s570 = smul.addr %s569, 4
        %s571 = scalar_lea.vmem %s1, %s570
        %p572 = scmp.lt.s32.totalorder %s39, 1
        %s573 = scalar_select %p572, %s39, 1
        %s574 = scalar_lea.vmem %s14, %s573
        %p575 = scmp.lt.s32.totalorder %s39, 1
        %s576 = scalar_select %p575, %s39, 1
        %s577 = scalar_lea.vmem %s15, %s576
        %v578 = vld [vmem:[%s571] sm:$0xf]
        %v579 = vld [vmem:[%s571 + $0x4] sm:$0xf]
        %v580 = vld [vmem:[%s571 + $0x8] sm:$0xf]
        %v581 = vld [vmem:[#allocation4] sm:$0xf]
        %v582 = vld [vmem:[#allocation4 + $0x4] sm:$0xf]
        %v583 = vld [vmem:[#allocation4 + $0x8] sm:$0xf]
        %v584 = vld [vmem:[#allocation4 + $0xc] sm:$0xf]
        %v585 = vld [vmem:[#allocation4 + $0x10] sm:$0xf]
        %v586 = vld [vmem:[#allocation4 + $0x14] sm:$0xf]
        %v587 = vld [vmem:[#allocation4 + $0x18] sm:$0xf]
        %v588 = vld [vmem:[#allocation4 + $0x1c] sm:$0xf]
        %v589 = vld [vmem:[#allocation4 + $0x20] sm:$0xf]
        %v590 = vld [vmem:[#allocation4 + $0x24] sm:$0xf]
        %v591 = vld [vmem:[#allocation4 + $0x28] sm:$0xf]
        %v592 = vld [vmem:[#allocation4 + $0x2c] sm:$0xf]
        %v593 = vld [vmem:[#allocation4 + $0x30] sm:$0xf]
        %v594 = vld [vmem:[#allocation4 + $0x34] sm:$0xf]
        %v595 = vld [vmem:[#allocation4 + $0x38] sm:$0xf]
        %v596 = vld [vmem:[#allocation4 + $0x3c] sm:$0xf]
        %v597 = vld [vmem:[#allocation6] sm:$0x1]
        %v599 = vperm.slane %v597, 0
        %v604 = vunpack.c.l.b16 %v578
        %v605 = vunpack.c.l.b16 %v579
        %v606 = vunpack.c.l.b16 %v580
        %v607 = vpack.c.b16 %v605, %v604
        %v608 = vpack.c.b16 %v606, %v606
        %v627 = vunpack.c.l.b16 %v581
        %v628 = vunpack.c.l.b16 %v582
        %v629 = vunpack.c.l.b16 %v583
        %v630 = vunpack.c.l.b16 %v584
        %v631 = vunpack.c.l.b16 %v585
        %v632 = vunpack.c.l.b16 %v586
        %v633 = vunpack.c.l.b16 %v587
        %v634 = vunpack.c.l.b16 %v588
        %v635 = vunpack.c.l.b16 %v589
        %v636 = vunpack.c.l.b16 %v590
        %v637 = vunpack.c.l.b16 %v591
        %v638 = vunpack.c.l.b16 %v592
        %v639 = vunpack.c.l.b16 %v593
        %v640 = vunpack.c.l.b16 %v594
        %v641 = vunpack.c.l.b16 %v595
        %v642 = vunpack.c.l.b16 %v596
        %v643 = vpack.c.b16 %v628, %v627
        %v644 = vpack.c.b16 %v630, %v629
        %v645 = vpack.c.b16 %v632, %v631
        %v646 = vpack.c.b16 %v634, %v633
        %v647 = vpack.c.b16 %v636, %v635
        %v648 = vpack.c.b16 %v638, %v637
        %v649 = vpack.c.b16 %v640, %v639
        %v650 = vpack.c.b16 %v642, %v641
        %659 = vmatpush.bf16.msra.mxu0 %v650
        %660 = vmatpush.bf16.msra.mxu0 %v649
        %661 = vmatpush.bf16.msra.mxu0 %v648
        %662 = vmatpush.bf16.msra.mxu0 %v647
        %663 = vmatpush.bf16.msra.mxu0 %v646
        %664 = vmatpush.bf16.msra.mxu0 %v645
        %665 = vmatpush.bf16.msra.mxu0 %v644
        %666 = vmatpush.bf16.msra.mxu0 %v643
        %667 = vmatmul.bf16.gmra.mxu0 %v607
        %v668 = vpop.f32.mrf.mxu0
        %v669 = vadd.f32 %v599, %v668
        %v670 = vpop.f32.mrf.mxu0
        %v671 = vadd.f32 %v599, %v670
        %672 = vmatmul.bf16.gmra.mxu0 %v608
        %v673 = vpop.f32.mrf.mxu0
        %v674 = vadd.f32 %v599, %v673
        %v675 = vpop.f32.mrf.mxu0
        %676 = vdwg.mxu0
        %v677 = vpack.c.bf16 %v671, %v669
        %v678 = vpack.c.bf16 %v674, %v674
        %v679 = vld [vmem:[#allocation8] sm:$0xf]
        %v680 = vld [vmem:[#allocation8 + $0x4] sm:$0xf]
        %v681 = vld [vmem:[#allocation8 + $0x8] sm:$0xf]
        %v682 = vld [vmem:[#allocation8 + $0xc] sm:$0xf]
        %v683 = vld [vmem:[#allocation8 + $0x10] sm:$0xf]
        %v684 = vld [vmem:[#allocation8 + $0x14] sm:$0xf]
        %v685 = vld [vmem:[#allocation8 + $0x18] sm:$0xf]
        %v686 = vld [vmem:[#allocation8 + $0x1c] sm:$0xf]
        %v687 = vld [vmem:[#allocation8 + $0x20] sm:$0xf]
        %v688 = vld [vmem:[#allocation8 + $0x24] sm:$0xf]
        %v689 = vld [vmem:[#allocation8 + $0x28] sm:$0xf]
        %v690 = vld [vmem:[#allocation8 + $0x2c] sm:$0xf]
        %v691 = vld [vmem:[#allocation8 + $0x30] sm:$0xf]
        %v692 = vld [vmem:[#allocation8 + $0x34] sm:$0xf]
        %v693 = vld [vmem:[#allocation8 + $0x38] sm:$0xf]
        %v694 = vld [vmem:[#allocation8 + $0x3c] sm:$0xf]
        %s695 = scalar_lea.vmem [#allocation8], 64
        %v696 = vld [vmem:[%s695] sm:$0xf]
        %v697 = vld [vmem:[%s695 + $0x4] sm:$0xf]
        %v698 = vld [vmem:[%s695 + $0x8] sm:$0xf]
        %v699 = vld [vmem:[%s695 + $0xc] sm:$0xf]
        %v700 = vld [vmem:[%s695 + $0x10] sm:$0xf]
        %v701 = vld [vmem:[%s695 + $0x14] sm:$0xf]
        %v702 = vld [vmem:[%s695 + $0x18] sm:$0xf]
        %v703 = vld [vmem:[%s695 + $0x1c] sm:$0xf]
        %v704 = vld [vmem:[%s695 + $0x20] sm:$0xf]
        %v705 = vld [vmem:[%s695 + $0x24] sm:$0xf]
        %v706 = vld [vmem:[%s695 + $0x28] sm:$0xf]
        %v707 = vld [vmem:[%s695 + $0x2c] sm:$0xf]
        %v708 = vld [vmem:[%s695 + $0x30] sm:$0xf]
        %v709 = vld [vmem:[%s695 + $0x34] sm:$0xf]
        %v710 = vld [vmem:[%s695 + $0x38] sm:$0xf]
        %v711 = vld [vmem:[%s695 + $0x3c] sm:$0xf]
        %vm712 = vsmask.f32 7424
        %v714 = vshrl.u32 %v677, 16
        %v716 = vshll.u32 %v677, 16
        %v718 = vrot.slane %v716, 1
        %v719 = vor.u32 %v714, %v718
        %v721 = vshll.u32 %v678, 16
        %v723 = vrot.slane %v721, 1
        %v724 = vsel %vm712, %v719, %v723
        %v725 = vshrl.u32 %v678, 16
        %v727 = vor.u32 %v725, %v723
        %v746 = vunpack.c.l.b16 %v696
        %v747 = vunpack.c.l.b16 %v697
        %v748 = vunpack.c.l.b16 %v698
        %v749 = vunpack.c.l.b16 %v699
        %v750 = vunpack.c.l.b16 %v700
        %v751 = vunpack.c.l.b16 %v701
        %v752 = vunpack.c.l.b16 %v702
        %v753 = vunpack.c.l.b16 %v703
        %v754 = vunpack.c.l.b16 %v704
        %v755 = vunpack.c.l.b16 %v705
        %v756 = vunpack.c.l.b16 %v706
        %v757 = vunpack.c.l.b16 %v707
        %v758 = vunpack.c.l.b16 %v708
        %v759 = vunpack.c.l.b16 %v709
        %v760 = vunpack.c.l.b16 %v710
        %v761 = vunpack.c.l.b16 %v711
        %v762 = vpack.c.b16 %v747, %v746
        %v763 = vpack.c.b16 %v749, %v748
        %v764 = vpack.c.b16 %v751, %v750
        %v765 = vpack.c.b16 %v753, %v752
        %v766 = vpack.c.b16 %v755, %v754
        %v767 = vpack.c.b16 %v757, %v756
        %v768 = vpack.c.b16 %v759, %v758
        %v769 = vpack.c.b16 %v761, %v760
        %778 = vmatpush.bf16.msra.mxu0 %v769
        %779 = vmatpush.bf16.msra.mxu0 %v768
        %780 = vmatpush.bf16.msra.mxu0 %v767
        %781 = vmatpush.bf16.msra.mxu0 %v766
        %782 = vmatpush.bf16.msra.mxu0 %v765
        %783 = vmatpush.bf16.msra.mxu0 %v764
        %784 = vmatpush.bf16.msra.mxu0 %v763
        %785 = vmatpush.bf16.msra.mxu0 %v762
        %786 = vmatmul.bf16.gmra.mxu0 %v724
        %v787 = vpop.f32.mrf.mxu0
        %v788 = vadd.f32 0.0, %v787
        %v789 = vpop.f32.mrf.mxu0
        %v790 = vadd.f32 0.0, %v789
        %791 = vmatmul.bf16.gmra.mxu0 %v727
        %v792 = vpop.f32.mrf.mxu0
        %v793 = vadd.f32 0.0, %v792
        %v794 = vpop.f32.mrf.mxu0
        %795 = vdwg.mxu0
        %v812 = vunpack.c.l.b16 %v679
        %v813 = vunpack.c.l.b16 %v680
        %v814 = vunpack.c.l.b16 %v681
        %v815 = vunpack.c.l.b16 %v682
        %v816 = vunpack.c.l.b16 %v683
        %v817 = vunpack.c.l.b16 %v684
        %v818 = vunpack.c.l.b16 %v685
        %v819 = vunpack.c.l.b16 %v686
        %v820 = vunpack.c.l.b16 %v687
        %v821 = vunpack.c.l.b16 %v688
        %v822 = vunpack.c.l.b16 %v689
        %v823 = vunpack.c.l.b16 %v690
        %v824 = vunpack.c.l.b16 %v691
        %v825 = vunpack.c.l.b16 %v692
        %v826 = vunpack.c.l.b16 %v693
        %v827 = vunpack.c.l.b16 %v694
        %v828 = vpack.c.b16 %v813, %v812
        %v829 = vpack.c.b16 %v815, %v814
        %v830 = vpack.c.b16 %v817, %v816
        %v831 = vpack.c.b16 %v819, %v818
        %v832 = vpack.c.b16 %v821, %v820
        %v833 = vpack.c.b16 %v823, %v822
        %v834 = vpack.c.b16 %v825, %v824
        %v835 = vpack.c.b16 %v827, %v826
        %844 = vmatpush.bf16.msra.mxu0 %v835
        %845 = vmatpush.bf16.msra.mxu0 %v834
        %846 = vmatpush.bf16.msra.mxu0 %v833
        %847 = vmatpush.bf16.msra.mxu0 %v832
        %848 = vmatpush.bf16.msra.mxu0 %v831
        %849 = vmatpush.bf16.msra.mxu0 %v830
        %850 = vmatpush.bf16.msra.mxu0 %v829
        %851 = vmatpush.bf16.msra.mxu0 %v828
        %852 = vmatmul.bf16.gmra.mxu0 %v677
        %v853 = vpop.f32.mrf.mxu0
        %v854 = vadd.f32 %v788, %v853
        %v855 = vpop.f32.mrf.mxu0
        %v856 = vadd.f32 %v790, %v855
        %857 = vmatmul.bf16.gmra.mxu0 %v678
        %v858 = vpop.f32.mrf.mxu0
        %v859 = vadd.f32 %v793, %v858
        %v860 = vpop.f32.mrf.mxu0
        %861 = vdwg.mxu0
        %s862 = scalar_lea.vmem [#allocation8], 128
        %v863 = vld [vmem:[%s862] sm:$0xf]
        %v864 = vld [vmem:[%s862 + $0x4] sm:$0xf]
        %v865 = vld [vmem:[%s862 + $0x8] sm:$0xf]
        %v866 = vld [vmem:[%s862 + $0xc] sm:$0xf]
        %v867 = vld [vmem:[%s862 + $0x10] sm:$0xf]
        %v868 = vld [vmem:[%s862 + $0x14] sm:$0xf]
        %v869 = vld [vmem:[%s862 + $0x18] sm:$0xf]
        %v870 = vld [vmem:[%s862 + $0x1c] sm:$0xf]
        %v871 = vld [vmem:[%s862 + $0x20] sm:$0xf]
        %v872 = vld [vmem:[%s862 + $0x24] sm:$0xf]
        %v873 = vld [vmem:[%s862 + $0x28] sm:$0xf]
        %v874 = vld [vmem:[%s862 + $0x2c] sm:$0xf]
        %v875 = vld [vmem:[%s862 + $0x30] sm:$0xf]
        %v876 = vld [vmem:[%s862 + $0x34] sm:$0xf]
        %v877 = vld [vmem:[%s862 + $0x38] sm:$0xf]
        %v878 = vld [vmem:[%s862 + $0x3c] sm:$0xf]
        %vm881 = vcmask 1046528
        %v882 = vrot.slane %v677, 1
        %v883 = vrot.slane %v678, 1
        %v884 = vsel %vm881, %v882, %v883
        %v903 = vunpack.c.l.b16 %v863
        %v904 = vunpack.c.l.b16 %v864
        %v905 = vunpack.c.l.b16 %v865
        %v906 = vunpack.c.l.b16 %v866
        %v907 = vunpack.c.l.b16 %v867
        %v908 = vunpack.c.l.b16 %v868
        %v909 = vunpack.c.l.b16 %v869
        %v910 = vunpack.c.l.b16 %v870
        %v911 = vunpack.c.l.b16 %v871
        %v912 = vunpack.c.l.b16 %v872
        %v913 = vunpack.c.l.b16 %v873
        %v914 = vunpack.c.l.b16 %v874
        %v915 = vunpack.c.l.b16 %v875
        %v916 = vunpack.c.l.b16 %v876
        %v917 = vunpack.c.l.b16 %v877
        %v918 = vunpack.c.l.b16 %v878
        %v919 = vpack.c.b16 %v904, %v903
        %v920 = vpack.c.b16 %v906, %v905
        %v921 = vpack.c.b16 %v908, %v907
        %v922 = vpack.c.b16 %v910, %v909
        %v923 = vpack.c.b16 %v912, %v911
        %v924 = vpack.c.b16 %v914, %v913
        %v925 = vpack.c.b16 %v916, %v915
        %v926 = vpack.c.b16 %v918, %v917
        %935 = vmatpush.bf16.msra.mxu0 %v926
        %936 = vmatpush.bf16.msra.mxu0 %v925
        %937 = vmatpush.bf16.msra.mxu0 %v924
        %938 = vmatpush.bf16.msra.mxu0 %v923
        %939 = vmatpush.bf16.msra.mxu0 %v922
        %940 = vmatpush.bf16.msra.mxu0 %v921
        %941 = vmatpush.bf16.msra.mxu0 %v920
        %942 = vmatpush.bf16.msra.mxu0 %v919
        %943 = vmatmul.bf16.gmra.mxu0 %v884
        %v944 = vpop.f32.mrf.mxu0
        %v945 = vadd.f32 0.0, %v944
        %v946 = vpop.f32.mrf.mxu0
        %v947 = vadd.f32 0.0, %v946
        %948 = vmatmul.bf16.gmra.mxu0 %v883
        %v949 = vpop.f32.mrf.mxu0
        %v950 = vadd.f32 0.0, %v949
        %v951 = vpop.f32.mrf.mxu0
        %952 = vdwg.mxu0
        %v953 = vadd.f32 %v854, %v945
        %v954 = vadd.f32 %v856, %v947
        %v955 = vadd.f32 %v859, %v950
        %s956 = scalar_lea.vmem [#allocation8], 192
        %v957 = vld [vmem:[%s956] sm:$0xf]
        %v958 = vld [vmem:[%s956 + $0x4] sm:$0xf]
        %v959 = vld [vmem:[%s956 + $0x8] sm:$0xf]
        %v960 = vld [vmem:[%s956 + $0xc] sm:$0xf]
        %v961 = vld [vmem:[%s956 + $0x10] sm:$0xf]
        %v962 = vld [vmem:[%s956 + $0x14] sm:$0xf]
        %v963 = vld [vmem:[%s956 + $0x18] sm:$0xf]
        %v964 = vld [vmem:[%s956 + $0x1c] sm:$0xf]
        %v965 = vld [vmem:[%s956 + $0x20] sm:$0xf]
        %v966 = vld [vmem:[%s956 + $0x24] sm:$0xf]
        %v967 = vld [vmem:[%s956 + $0x28] sm:$0xf]
        %v968 = vld [vmem:[%s956 + $0x2c] sm:$0xf]
        %v969 = vld [vmem:[%s956 + $0x30] sm:$0xf]
        %v970 = vld [vmem:[%s956 + $0x34] sm:$0xf]
        %v971 = vld [vmem:[%s956 + $0x38] sm:$0xf]
        %v972 = vld [vmem:[%s956 + $0x3c] sm:$0xf]
        %vm973 = vsmask.f32 6400
        %v974 = vrot.slane %v714, 1
        %v975 = vrot.slane %v716, 2
        %v976 = vor.u32 %v974, %v975
        %v977 = vrot.slane %v725, 1
        %v978 = vrot.slane %v721, 2
        %v979 = vor.u32 %v977, %v978
        %v980 = vsel %vm973, %v976, %v979
        %v999 = vunpack.c.l.b16 %v957
        %v1000 = vunpack.c.l.b16 %v958
        %v1001 = vunpack.c.l.b16 %v959
        %v1002 = vunpack.c.l.b16 %v960
        %v1003 = vunpack.c.l.b16 %v961
        %v1004 = vunpack.c.l.b16 %v962
        %v1005 = vunpack.c.l.b16 %v963
        %v1006 = vunpack.c.l.b16 %v964
        %v1007 = vunpack.c.l.b16 %v965
        %v1008 = vunpack.c.l.b16 %v966
        %v1009 = vunpack.c.l.b16 %v967
        %v1010 = vunpack.c.l.b16 %v968
        %v1011 = vunpack.c.l.b16 %v969
        %v1012 = vunpack.c.l.b16 %v970
        %v1013 = vunpack.c.l.b16 %v971
        %v1014 = vunpack.c.l.b16 %v972
        %v1015 = vpack.c.b16 %v1000, %v999
        %v1016 = vpack.c.b16 %v1002, %v1001
        %v1017 = vpack.c.b16 %v1004, %v1003
        %v1018 = vpack.c.b16 %v1006, %v1005
        %v1019 = vpack.c.b16 %v1008, %v1007
        %v1020 = vpack.c.b16 %v1010, %v1009
        %v1021 = vpack.c.b16 %v1012, %v1011
        %v1022 = vpack.c.b16 %v1014, %v1013
        %1031 = vmatpush.bf16.msra.mxu0 %v1022
        %1032 = vmatpush.bf16.msra.mxu0 %v1021
        %1033 = vmatpush.bf16.msra.mxu0 %v1020
        %1034 = vmatpush.bf16.msra.mxu0 %v1019
        %1035 = vmatpush.bf16.msra.mxu0 %v1018
        %1036 = vmatpush.bf16.msra.mxu0 %v1017
        %1037 = vmatpush.bf16.msra.mxu0 %v1016
        %1038 = vmatpush.bf16.msra.mxu0 %v1015
        %1039 = vmatmul.bf16.gmra.mxu0 %v980
        %v1040 = vpop.f32.mrf.mxu0
        %v1041 = vadd.f32 0.0, %v1040
        %v1042 = vpop.f32.mrf.mxu0
        %v1043 = vadd.f32 0.0, %v1042
        %1044 = vmatmul.bf16.gmra.mxu0 %v979
        %v1045 = vpop.f32.mrf.mxu0
        %v1046 = vadd.f32 0.0, %v1045
        %v1047 = vpop.f32.mrf.mxu0
        %1048 = vdwg.mxu0
        %v1049 = vadd.f32 %v953, %v1041
        %v1050 = vadd.f32 %v954, %v1043
        %v1051 = vadd.f32 %v955, %v1046
        %s1052 = scalar_lea.vmem [#allocation8], 256
        %v1053 = vld [vmem:[%s1052] sm:$0xf]
        %v1054 = vld [vmem:[%s1052 + $0x4] sm:$0xf]
        %v1055 = vld [vmem:[%s1052 + $0x8] sm:$0xf]
        %v1056 = vld [vmem:[%s1052 + $0xc] sm:$0xf]
        %v1057 = vld [vmem:[%s1052 + $0x10] sm:$0xf]
        %v1058 = vld [vmem:[%s1052 + $0x14] sm:$0xf]
        %v1059 = vld [vmem:[%s1052 + $0x18] sm:$0xf]
        %v1060 = vld [vmem:[%s1052 + $0x1c] sm:$0xf]
        %v1061 = vld [vmem:[%s1052 + $0x20] sm:$0xf]
        %v1062 = vld [vmem:[%s1052 + $0x24] sm:$0xf]
        %v1063 = vld [vmem:[%s1052 + $0x28] sm:$0xf]
        %v1064 = vld [vmem:[%s1052 + $0x2c] sm:$0xf]
        %v1065 = vld [vmem:[%s1052 + $0x30] sm:$0xf]
        %v1066 = vld [vmem:[%s1052 + $0x34] sm:$0xf]
        %v1067 = vld [vmem:[%s1052 + $0x38] sm:$0xf]
        %v1068 = vld [vmem:[%s1052 + $0x3c] sm:$0xf]
        %vm1069 = vcmask 1045504
        %v1070 = vrot.slane %v677, 2
        %v1071 = vrot.slane %v678, 2
        %v1072 = vsel %vm1069, %v1070, %v1071
        %v1091 = vunpack.c.l.b16 %v1053
        %v1092 = vunpack.c.l.b16 %v1054
        %v1093 = vunpack.c.l.b16 %v1055
        %v1094 = vunpack.c.l.b16 %v1056
        %v1095 = vunpack.c.l.b16 %v1057
        %v1096 = vunpack.c.l.b16 %v1058
        %v1097 = vunpack.c.l.b16 %v1059
        %v1098 = vunpack.c.l.b16 %v1060
        %v1099 = vunpack.c.l.b16 %v1061
        %v1100 = vunpack.c.l.b16 %v1062
        %v1101 = vunpack.c.l.b16 %v1063
        %v1102 = vunpack.c.l.b16 %v1064
        %v1103 = vunpack.c.l.b16 %v1065
        %v1104 = vunpack.c.l.b16 %v1066
        %v1105 = vunpack.c.l.b16 %v1067
        %v1106 = vunpack.c.l.b16 %v1068
        %v1107 = vpack.c.b16 %v1092, %v1091
        %v1108 = vpack.c.b16 %v1094, %v1093
        %v1109 = vpack.c.b16 %v1096, %v1095
        %v1110 = vpack.c.b16 %v1098, %v1097
        %v1111 = vpack.c.b16 %v1100, %v1099
        %v1112 = vpack.c.b16 %v1102, %v1101
        %v1113 = vpack.c.b16 %v1104, %v1103
        %v1114 = vpack.c.b16 %v1106, %v1105
        %1123 = vmatpush.bf16.msra.mxu0 %v1114
        %1124 = vmatpush.bf16.msra.mxu0 %v1113
        %1125 = vmatpush.bf16.msra.mxu0 %v1112
        %1126 = vmatpush.bf16.msra.mxu0 %v1111
        %1127 = vmatpush.bf16.msra.mxu0 %v1110
        %1128 = vmatpush.bf16.msra.mxu0 %v1109
        %1129 = vmatpush.bf16.msra.mxu0 %v1108
        %1130 = vmatpush.bf16.msra.mxu0 %v1107
        %1131 = vmatmul.bf16.gmra.mxu0 %v1072
        %v1132 = vpop.f32.mrf.mxu0
        %v1133 = vadd.f32 0.0, %v1132
        %v1134 = vpop.f32.mrf.mxu0
        %v1135 = vadd.f32 0.0, %v1134
        %1136 = vmatmul.bf16.gmra.mxu0 %v1071
        %v1137 = vpop.f32.mrf.mxu0
        %v1138 = vadd.f32 0.0, %v1137
        %v1139 = vpop.f32.mrf.mxu0
        %1140 = vdwg.mxu0
        %v1141 = vadd.f32 %v1049, %v1133
        %v1142 = vadd.f32 %v1050, %v1135
        %v1143 = vadd.f32 %v1051, %v1138
        %v1144 = vld [vmem:[#allocation9] sm:$0x1]
        %v1146 = vperm.slane %v1144, 0
        %v1148 = vadd.f32 %v1141, %v1146
        %v1149 = vadd.f32 %v1142, %v1146
        %v1150 = vadd.f32 %v1143, %v1146
        %v1151 = vmax.f32 %v1148, 0.0
        %v1152 = vmax.f32 %v1149, 0.0
        %v1153 = vmax.f32 %v1150, 0.0
        %v1154 = vpack.c.bf16 %v1152, %v1151
        %v1155 = vld [vmem:[#allocation11] sm:$0xf]
        %v1156 = vld [vmem:[#allocation11 + $0x4] sm:$0xf]
        %v1157 = vld [vmem:[#allocation11 + $0x8] sm:$0xf]
        %v1158 = vld [vmem:[#allocation11 + $0xc] sm:$0xf]
        %v1159 = vld [vmem:[#allocation11 + $0x10] sm:$0xf]
        %v1160 = vld [vmem:[#allocation11 + $0x14] sm:$0xf]
        %v1161 = vld [vmem:[#allocation11 + $0x18] sm:$0xf]
        %v1162 = vld [vmem:[#allocation11 + $0x1c] sm:$0xf]
        %v1163 = vld [vmem:[#allocation11 + $0x20] sm:$0xf]
        %v1164 = vld [vmem:[#allocation11 + $0x24] sm:$0xf]
        %v1165 = vld [vmem:[#allocation11 + $0x28] sm:$0xf]
        %v1166 = vld [vmem:[#allocation11 + $0x2c] sm:$0xf]
        %v1167 = vld [vmem:[#allocation11 + $0x30] sm:$0xf]
        %v1168 = vld [vmem:[#allocation11 + $0x34] sm:$0xf]
        %v1169 = vld [vmem:[#allocation11 + $0x38] sm:$0xf]
        %v1170 = vld [vmem:[#allocation11 + $0x3c] sm:$0xf]
        %v1171 = vpack.c.bf16 %v1153, %v1153
        %s1172 = scalar_lea.vmem [#allocation11], 64
        %v1173 = vld [vmem:[%s1172] sm:$0xf]
        %v1174 = vld [vmem:[%s1172 + $0x4] sm:$0xf]
        %v1175 = vld [vmem:[%s1172 + $0x8] sm:$0xf]
        %v1176 = vld [vmem:[%s1172 + $0xc] sm:$0xf]
        %v1177 = vld [vmem:[%s1172 + $0x10] sm:$0xf]
        %v1178 = vld [vmem:[%s1172 + $0x14] sm:$0xf]
        %v1179 = vld [vmem:[%s1172 + $0x18] sm:$0xf]
        %v1180 = vld [vmem:[%s1172 + $0x1c] sm:$0xf]
        %v1181 = vld [vmem:[%s1172 + $0x20] sm:$0xf]
        %v1182 = vld [vmem:[%s1172 + $0x24] sm:$0xf]
        %v1183 = vld [vmem:[%s1172 + $0x28] sm:$0xf]
        %v1184 = vld [vmem:[%s1172 + $0x2c] sm:$0xf]
        %v1185 = vld [vmem:[%s1172 + $0x30] sm:$0xf]
        %v1186 = vld [vmem:[%s1172 + $0x34] sm:$0xf]
        %v1187 = vld [vmem:[%s1172 + $0x38] sm:$0xf]
        %v1188 = vld [vmem:[%s1172 + $0x3c] sm:$0xf]
        %v1191 = vrot.slane %v1154, 1
        %v1192 = vrot.slane %v1171, 1
        %v1193 = vsel %vm881, %v1191, %v1192
        %v1211 = vunpack.c.l.b16 %v1173
        %v1212 = vunpack.c.l.b16 %v1174
        %v1213 = vunpack.c.l.b16 %v1175
        %v1214 = vunpack.c.l.b16 %v1176
        %v1215 = vunpack.c.l.b16 %v1177
        %v1216 = vunpack.c.l.b16 %v1178
        %v1217 = vunpack.c.l.b16 %v1179
        %v1218 = vunpack.c.l.b16 %v1180
        %v1219 = vunpack.c.l.b16 %v1181
        %v1220 = vunpack.c.l.b16 %v1182
        %v1221 = vunpack.c.l.b16 %v1183
        %v1222 = vunpack.c.l.b16 %v1184
        %v1223 = vunpack.c.l.b16 %v1185
        %v1224 = vunpack.c.l.b16 %v1186
        %v1225 = vunpack.c.l.b16 %v1187
        %v1226 = vunpack.c.l.b16 %v1188
        %v1227 = vpack.c.b16 %v1212, %v1211
        %v1228 = vpack.c.b16 %v1214, %v1213
        %v1229 = vpack.c.b16 %v1216, %v1215
        %v1230 = vpack.c.b16 %v1218, %v1217
        %v1231 = vpack.c.b16 %v1220, %v1219
        %v1232 = vpack.c.b16 %v1222, %v1221
        %v1233 = vpack.c.b16 %v1224, %v1223
        %v1234 = vpack.c.b16 %v1226, %v1225
        %1243 = vmatpush.bf16.msra.mxu0 %v1234
        %1244 = vmatpush.bf16.msra.mxu0 %v1233
        %1245 = vmatpush.bf16.msra.mxu0 %v1232
        %1246 = vmatpush.bf16.msra.mxu0 %v1231
        %1247 = vmatpush.bf16.msra.mxu0 %v1230
        %1248 = vmatpush.bf16.msra.mxu0 %v1229
        %1249 = vmatpush.bf16.msra.mxu0 %v1228
        %1250 = vmatpush.bf16.msra.mxu0 %v1227
        %1251 = vmatmul.bf16.gmra.mxu0 %v1193
        %v1252 = vpop.f32.mrf.mxu0
        %v1253 = vadd.f32 0.0, %v1252
        %v1254 = vpop.f32.mrf.mxu0
        %v1255 = vadd.f32 0.0, %v1254
        %1256 = vdwg.mxu0
        %v1273 = vunpack.c.l.b16 %v1155
        %v1274 = vunpack.c.l.b16 %v1156
        %v1275 = vunpack.c.l.b16 %v1157
        %v1276 = vunpack.c.l.b16 %v1158
        %v1277 = vunpack.c.l.b16 %v1159
        %v1278 = vunpack.c.l.b16 %v1160
        %v1279 = vunpack.c.l.b16 %v1161
        %v1280 = vunpack.c.l.b16 %v1162
        %v1281 = vunpack.c.l.b16 %v1163
        %v1282 = vunpack.c.l.b16 %v1164
        %v1283 = vunpack.c.l.b16 %v1165
        %v1284 = vunpack.c.l.b16 %v1166
        %v1285 = vunpack.c.l.b16 %v1167
        %v1286 = vunpack.c.l.b16 %v1168
        %v1287 = vunpack.c.l.b16 %v1169
        %v1288 = vunpack.c.l.b16 %v1170
        %v1289 = vpack.c.b16 %v1274, %v1273
        %v1290 = vpack.c.b16 %v1276, %v1275
        %v1291 = vpack.c.b16 %v1278, %v1277
        %v1292 = vpack.c.b16 %v1280, %v1279
        %v1293 = vpack.c.b16 %v1282, %v1281
        %v1294 = vpack.c.b16 %v1284, %v1283
        %v1295 = vpack.c.b16 %v1286, %v1285
        %v1296 = vpack.c.b16 %v1288, %v1287
        %1305 = vmatpush.bf16.msra.mxu0 %v1296
        %1306 = vmatpush.bf16.msra.mxu0 %v1295
        %1307 = vmatpush.bf16.msra.mxu0 %v1294
        %1308 = vmatpush.bf16.msra.mxu0 %v1293
        %1309 = vmatpush.bf16.msra.mxu0 %v1292
        %1310 = vmatpush.bf16.msra.mxu0 %v1291
        %1311 = vmatpush.bf16.msra.mxu0 %v1290
        %1312 = vmatpush.bf16.msra.mxu0 %v1289
        %1313 = vmatmul.bf16.gmra.mxu0 %v1154
        %v1314 = vpop.f32.mrf.mxu0
        %v1315 = vadd.f32 %v1253, %v1314
        %v1316 = vpop.f32.mrf.mxu0
        %v1317 = vadd.f32 %v1255, %v1316
        %1318 = vdwg.mxu0
        %s1319 = scalar_lea.vmem [#allocation11], 128
        %v1320 = vld [vmem:[%s1319] sm:$0xf]
        %v1321 = vld [vmem:[%s1319 + $0x4] sm:$0xf]
        %v1322 = vld [vmem:[%s1319 + $0x8] sm:$0xf]
        %v1323 = vld [vmem:[%s1319 + $0xc] sm:$0xf]
        %v1324 = vld [vmem:[%s1319 + $0x10] sm:$0xf]
        %v1325 = vld [vmem:[%s1319 + $0x14] sm:$0xf]
        %v1326 = vld [vmem:[%s1319 + $0x18] sm:$0xf]
        %v1327 = vld [vmem:[%s1319 + $0x1c] sm:$0xf]
        %v1328 = vld [vmem:[%s1319 + $0x20] sm:$0xf]
        %v1329 = vld [vmem:[%s1319 + $0x24] sm:$0xf]
        %v1330 = vld [vmem:[%s1319 + $0x28] sm:$0xf]
        %v1331 = vld [vmem:[%s1319 + $0x2c] sm:$0xf]
        %v1332 = vld [vmem:[%s1319 + $0x30] sm:$0xf]
        %v1333 = vld [vmem:[%s1319 + $0x34] sm:$0xf]
        %v1334 = vld [vmem:[%s1319 + $0x38] sm:$0xf]
        %v1335 = vld [vmem:[%s1319 + $0x3c] sm:$0xf]
        %v1336 = vrot.slane %v1154, 2
        %v1337 = vrot.slane %v1171, 2
        %v1338 = vsel %vm1069, %v1336, %v1337
        %v1356 = vunpack.c.l.b16 %v1320
        %v1357 = vunpack.c.l.b16 %v1321
        %v1358 = vunpack.c.l.b16 %v1322
        %v1359 = vunpack.c.l.b16 %v1323
        %v1360 = vunpack.c.l.b16 %v1324
        %v1361 = vunpack.c.l.b16 %v1325
        %v1362 = vunpack.c.l.b16 %v1326
        %v1363 = vunpack.c.l.b16 %v1327
        %v1364 = vunpack.c.l.b16 %v1328
        %v1365 = vunpack.c.l.b16 %v1329
        %v1366 = vunpack.c.l.b16 %v1330
        %v1367 = vunpack.c.l.b16 %v1331
        %v1368 = vunpack.c.l.b16 %v1332
        %v1369 = vunpack.c.l.b16 %v1333
        %v1370 = vunpack.c.l.b16 %v1334
        %v1371 = vunpack.c.l.b16 %v1335
        %v1372 = vpack.c.b16 %v1357, %v1356
        %v1373 = vpack.c.b16 %v1359, %v1358
        %v1374 = vpack.c.b16 %v1361, %v1360
        %v1375 = vpack.c.b16 %v1363, %v1362
        %v1376 = vpack.c.b16 %v1365, %v1364
        %v1377 = vpack.c.b16 %v1367, %v1366
        %v1378 = vpack.c.b16 %v1369, %v1368
        %v1379 = vpack.c.b16 %v1371, %v1370
        %1388 = vmatpush.bf16.msra.mxu0 %v1379
        %1389 = vmatpush.bf16.msra.mxu0 %v1378
        %1390 = vmatpush.bf16.msra.mxu0 %v1377
        %1391 = vmatpush.bf16.msra.mxu0 %v1376
        %1392 = vmatpush.bf16.msra.mxu0 %v1375
        %1393 = vmatpush.bf16.msra.mxu0 %v1374
        %1394 = vmatpush.bf16.msra.mxu0 %v1373
        %1395 = vmatpush.bf16.msra.mxu0 %v1372
        %1396 = vmatmul.bf16.gmra.mxu0 %v1338
        %v1397 = vpop.f32.mrf.mxu0
        %v1398 = vadd.f32 0.0, %v1397
        %v1399 = vpop.f32.mrf.mxu0
        %v1400 = vadd.f32 0.0, %v1399
        %1401 = vdwg.mxu0
        %v1402 = vadd.f32 %v1315, %v1398
        %v1403 = vadd.f32 %v1317, %v1400
        %v1404 = vld [vmem:[%s7] sm:$0x1]
        %v1406 = vperm.slane %v1404, 0
        %v1408 = vadd.f32 %v1402, %v1406
        %v1409 = vadd.f32 %v1403, %v1406
        %v1410 = vmax.f32 %v1408, 0.0
        %v1411 = vmax.f32 %v1409, 0.0
        %v1412 = vpack.c.bf16 %v1411, %v1410
        %v1413 = vld [vmem:[#allocation12] sm:$0xf]
        %v1414 = vld [vmem:[#allocation12 + $0x4] sm:$0xf]
        %v1415 = vld [vmem:[#allocation12 + $0x8] sm:$0xf]
        %v1416 = vld [vmem:[#allocation12 + $0xc] sm:$0xf]
        %v1417 = vld [vmem:[#allocation12 + $0x10] sm:$0xf]
        %v1418 = vld [vmem:[#allocation12 + $0x14] sm:$0xf]
        %v1419 = vld [vmem:[#allocation12 + $0x18] sm:$0xf]
        %v1420 = vld [vmem:[#allocation12 + $0x1c] sm:$0xf]
        %v1421 = vld [vmem:[#allocation12 + $0x20] sm:$0xf]
        %v1422 = vld [vmem:[#allocation12 + $0x24] sm:$0xf]
        %v1423 = vld [vmem:[#allocation12 + $0x28] sm:$0xf]
        %v1424 = vld [vmem:[#allocation12 + $0x2c] sm:$0xf]
        %v1425 = vld [vmem:[#allocation12 + $0x30] sm:$0xf]
        %v1426 = vld [vmem:[#allocation12 + $0x34] sm:$0xf]
        %v1427 = vld [vmem:[#allocation12 + $0x38] sm:$0xf]
        %v1428 = vld [vmem:[#allocation12 + $0x3c] sm:$0xf]
        %s1429 = scalar_lea.vmem [#allocation12], 64
        %v1430 = vld [vmem:[%s1429] sm:$0xf]
        %v1431 = vld [vmem:[%s1429 + $0x4] sm:$0xf]
        %v1432 = vld [vmem:[%s1429 + $0x8] sm:$0xf]
        %v1433 = vld [vmem:[%s1429 + $0xc] sm:$0xf]
        %v1434 = vld [vmem:[%s1429 + $0x10] sm:$0xf]
        %v1435 = vld [vmem:[%s1429 + $0x14] sm:$0xf]
        %v1436 = vld [vmem:[%s1429 + $0x18] sm:$0xf]
        %v1437 = vld [vmem:[%s1429 + $0x1c] sm:$0xf]
        %v1438 = vld [vmem:[%s1429 + $0x20] sm:$0xf]
        %v1439 = vld [vmem:[%s1429 + $0x24] sm:$0xf]
        %v1440 = vld [vmem:[%s1429 + $0x28] sm:$0xf]
        %v1441 = vld [vmem:[%s1429 + $0x2c] sm:$0xf]
        %v1442 = vld [vmem:[%s1429 + $0x30] sm:$0xf]
        %v1443 = vld [vmem:[%s1429 + $0x34] sm:$0xf]
        %v1444 = vld [vmem:[%s1429 + $0x38] sm:$0xf]
        %v1445 = vld [vmem:[%s1429 + $0x3c] sm:$0xf]
        %v1447 = vshrl.u32 %v1412, 16
        %v1449 = vrot.slane %v1447, 1
        %v1450 = vshll.u32 %v1412, 16
        %v1452 = vrot.slane %v1450, 2
        %v1453 = vor.u32 %v1449, %v1452
        %v1471 = vunpack.c.l.b16 %v1430
        %v1472 = vunpack.c.l.b16 %v1431
        %v1473 = vunpack.c.l.b16 %v1432
        %v1474 = vunpack.c.l.b16 %v1433
        %v1475 = vunpack.c.l.b16 %v1434
        %v1476 = vunpack.c.l.b16 %v1435
        %v1477 = vunpack.c.l.b16 %v1436
        %v1478 = vunpack.c.l.b16 %v1437
        %v1479 = vunpack.c.l.b16 %v1438
        %v1480 = vunpack.c.l.b16 %v1439
        %v1481 = vunpack.c.l.b16 %v1440
        %v1482 = vunpack.c.l.b16 %v1441
        %v1483 = vunpack.c.l.b16 %v1442
        %v1484 = vunpack.c.l.b16 %v1443
        %v1485 = vunpack.c.l.b16 %v1444
        %v1486 = vunpack.c.l.b16 %v1445
        %v1487 = vpack.c.b16 %v1472, %v1471
        %v1488 = vpack.c.b16 %v1474, %v1473
        %v1489 = vpack.c.b16 %v1476, %v1475
        %v1490 = vpack.c.b16 %v1478, %v1477
        %v1491 = vpack.c.b16 %v1480, %v1479
        %v1492 = vpack.c.b16 %v1482, %v1481
        %v1493 = vpack.c.b16 %v1484, %v1483
        %v1494 = vpack.c.b16 %v1486, %v1485
        %1503 = vmatpush.bf16.msra.mxu0 %v1494
        %1504 = vmatpush.bf16.msra.mxu0 %v1493
        %1505 = vmatpush.bf16.msra.mxu0 %v1492
        %1506 = vmatpush.bf16.msra.mxu0 %v1491
        %1507 = vmatpush.bf16.msra.mxu0 %v1490
        %1508 = vmatpush.bf16.msra.mxu0 %v1489
        %1509 = vmatpush.bf16.msra.mxu0 %v1488
        %1510 = vmatpush.bf16.msra.mxu0 %v1487
        %1511 = vmatmul.bf16.gmra.mxu0 %v1453
        %v1512 = vpop.f32.mrf.mxu0
        %v1513 = vadd.f32 0.0, %v1512
        %v1514 = vpop.f32.mrf.mxu0
        %v1515 = vadd.f32 0.0, %v1514
        %1516 = vdwg.mxu0
        %v1533 = vunpack.c.l.b16 %v1413
        %v1534 = vunpack.c.l.b16 %v1414
        %v1535 = vunpack.c.l.b16 %v1415
        %v1536 = vunpack.c.l.b16 %v1416
        %v1537 = vunpack.c.l.b16 %v1417
        %v1538 = vunpack.c.l.b16 %v1418
        %v1539 = vunpack.c.l.b16 %v1419
        %v1540 = vunpack.c.l.b16 %v1420
        %v1541 = vunpack.c.l.b16 %v1421
        %v1542 = vunpack.c.l.b16 %v1422
        %v1543 = vunpack.c.l.b16 %v1423
        %v1544 = vunpack.c.l.b16 %v1424
        %v1545 = vunpack.c.l.b16 %v1425
        %v1546 = vunpack.c.l.b16 %v1426
        %v1547 = vunpack.c.l.b16 %v1427
        %v1548 = vunpack.c.l.b16 %v1428
        %v1549 = vpack.c.b16 %v1534, %v1533
        %v1550 = vpack.c.b16 %v1536, %v1535
        %v1551 = vpack.c.b16 %v1538, %v1537
        %v1552 = vpack.c.b16 %v1540, %v1539
        %v1553 = vpack.c.b16 %v1542, %v1541
        %v1554 = vpack.c.b16 %v1544, %v1543
        %v1555 = vpack.c.b16 %v1546, %v1545
        %v1556 = vpack.c.b16 %v1548, %v1547
        %1565 = vmatpush.bf16.msra.mxu0 %v1556
        %1566 = vmatpush.bf16.msra.mxu0 %v1555
        %1567 = vmatpush.bf16.msra.mxu0 %v1554
        %1568 = vmatpush.bf16.msra.mxu0 %v1553
        %1569 = vmatpush.bf16.msra.mxu0 %v1552
        %1570 = vmatpush.bf16.msra.mxu0 %v1551
        %1571 = vmatpush.bf16.msra.mxu0 %v1550
        %1572 = vmatpush.bf16.msra.mxu0 %v1549
        %1573 = vmatmul.bf16.gmra.mxu0 %v1412
        %v1574 = vpop.f32.mrf.mxu0
        %v1575 = vadd.f32 %v1513, %v1574
        %v1576 = vpop.f32.mrf.mxu0
        %v1577 = vadd.f32 %v1515, %v1576
        %1578 = vdwg.mxu0
        %s1579 = scalar_lea.vmem [#allocation12], 128
        %v1580 = vld [vmem:[%s1579] sm:$0xf]
        %v1581 = vld [vmem:[%s1579 + $0x4] sm:$0xf]
        %v1582 = vld [vmem:[%s1579 + $0x8] sm:$0xf]
        %v1583 = vld [vmem:[%s1579 + $0xc] sm:$0xf]
        %v1584 = vld [vmem:[%s1579 + $0x10] sm:$0xf]
        %v1585 = vld [vmem:[%s1579 + $0x14] sm:$0xf]
        %v1586 = vld [vmem:[%s1579 + $0x18] sm:$0xf]
        %v1587 = vld [vmem:[%s1579 + $0x1c] sm:$0xf]
        %v1588 = vld [vmem:[%s1579 + $0x20] sm:$0xf]
        %v1589 = vld [vmem:[%s1579 + $0x24] sm:$0xf]
        %v1590 = vld [vmem:[%s1579 + $0x28] sm:$0xf]
        %v1591 = vld [vmem:[%s1579 + $0x2c] sm:$0xf]
        %v1592 = vld [vmem:[%s1579 + $0x30] sm:$0xf]
        %v1593 = vld [vmem:[%s1579 + $0x34] sm:$0xf]
        %v1594 = vld [vmem:[%s1579 + $0x38] sm:$0xf]
        %v1595 = vld [vmem:[%s1579 + $0x3c] sm:$0xf]
        %v1597 = vrot.slane %v1412, 3
        %v1615 = vunpack.c.l.b16 %v1580
        %v1616 = vunpack.c.l.b16 %v1581
        %v1617 = vunpack.c.l.b16 %v1582
        %v1618 = vunpack.c.l.b16 %v1583
        %v1619 = vunpack.c.l.b16 %v1584
        %v1620 = vunpack.c.l.b16 %v1585
        %v1621 = vunpack.c.l.b16 %v1586
        %v1622 = vunpack.c.l.b16 %v1587
        %v1623 = vunpack.c.l.b16 %v1588
        %v1624 = vunpack.c.l.b16 %v1589
        %v1625 = vunpack.c.l.b16 %v1590
        %v1626 = vunpack.c.l.b16 %v1591
        %v1627 = vunpack.c.l.b16 %v1592
        %v1628 = vunpack.c.l.b16 %v1593
        %v1629 = vunpack.c.l.b16 %v1594
        %v1630 = vunpack.c.l.b16 %v1595
        %v1631 = vpack.c.b16 %v1616, %v1615
        %v1632 = vpack.c.b16 %v1618, %v1617
        %v1633 = vpack.c.b16 %v1620, %v1619
        %v1634 = vpack.c.b16 %v1622, %v1621
        %v1635 = vpack.c.b16 %v1624, %v1623
        %v1636 = vpack.c.b16 %v1626, %v1625
        %v1637 = vpack.c.b16 %v1628, %v1627
        %v1638 = vpack.c.b16 %v1630, %v1629
        %1647 = vmatpush.bf16.msra.mxu0 %v1638
        %1648 = vmatpush.bf16.msra.mxu0 %v1637
        %1649 = vmatpush.bf16.msra.mxu0 %v1636
        %1650 = vmatpush.bf16.msra.mxu0 %v1635
        %1651 = vmatpush.bf16.msra.mxu0 %v1634
        %1652 = vmatpush.bf16.msra.mxu0 %v1633
        %1653 = vmatpush.bf16.msra.mxu0 %v1632
        %1654 = vmatpush.bf16.msra.mxu0 %v1631
        %1655 = vmatmul.bf16.gmra.mxu0 %v1597
        %v1656 = vpop.f32.mrf.mxu0
        %v1657 = vadd.f32 0.0, %v1656
        %v1658 = vpop.f32.mrf.mxu0
        %v1659 = vadd.f32 0.0, %v1658
        %1660 = vdwg.mxu0
        %v1661 = vadd.f32 %v1575, %v1657
        %v1662 = vadd.f32 %v1577, %v1659
        %v1663 = vld [vmem:[%s9] sm:$0x1]
        %v1665 = vperm.slane %v1663, 0
        %v1667 = vadd.f32 %v1661, %v1665
        %v1668 = vadd.f32 %v1662, %v1665
        %v1669 = vmax.f32 %v1667, 0.0
        %v1670 = vmax.f32 %v1668, 0.0
        %v1671 = vpack.c.bf16 %v1670, %v1669
        %v1672 = vld [vmem:[%s10] sm:$0xf]
        %v1673 = vld [vmem:[%s10 + $0x4] sm:$0xf]
        %v1674 = vld [vmem:[%s10 + $0x8] sm:$0xf]
        %v1675 = vld [vmem:[%s10 + $0xc] sm:$0xf]
        %v1676 = vld [vmem:[%s10 + $0x10] sm:$0xf]
        %v1677 = vld [vmem:[%s10 + $0x14] sm:$0xf]
        %v1678 = vld [vmem:[%s10 + $0x18] sm:$0xf]
        %v1679 = vld [vmem:[%s10 + $0x1c] sm:$0xf]
        %v1680 = vld [vmem:[%s10 + $0x20] sm:$0xf]
        %v1681 = vld [vmem:[%s10 + $0x24] sm:$0xf]
        %v1682 = vld [vmem:[%s10 + $0x28] sm:$0xf]
        %v1683 = vld [vmem:[%s10 + $0x2c] sm:$0xf]
        %v1684 = vld [vmem:[%s10 + $0x30] sm:$0xf]
        %v1685 = vld [vmem:[%s10 + $0x34] sm:$0xf]
        %v1686 = vld [vmem:[%s10 + $0x38] sm:$0xf]
        %v1687 = vld [vmem:[%s10 + $0x3c] sm:$0xf]
        %v1688 = vld [vmem:[%s11] sm:$0x1]
        %v1690 = vperm.slane %v1688, 0
        %v1708 = vunpack.c.l.b16 %v1672
        %v1709 = vunpack.c.l.b16 %v1673
        %v1710 = vunpack.c.l.b16 %v1674
        %v1711 = vunpack.c.l.b16 %v1675
        %v1712 = vunpack.c.l.b16 %v1676
        %v1713 = vunpack.c.l.b16 %v1677
        %v1714 = vunpack.c.l.b16 %v1678
        %v1715 = vunpack.c.l.b16 %v1679
        %v1716 = vunpack.c.l.b16 %v1680
        %v1717 = vunpack.c.l.b16 %v1681
        %v1718 = vunpack.c.l.b16 %v1682
        %v1719 = vunpack.c.l.b16 %v1683
        %v1720 = vunpack.c.l.b16 %v1684
        %v1721 = vunpack.c.l.b16 %v1685
        %v1722 = vunpack.c.l.b16 %v1686
        %v1723 = vunpack.c.l.b16 %v1687
        %v1724 = vpack.c.b16 %v1709, %v1708
        %v1725 = vpack.c.b16 %v1711, %v1710
        %v1726 = vpack.c.b16 %v1713, %v1712
        %v1727 = vpack.c.b16 %v1715, %v1714
        %v1728 = vpack.c.b16 %v1717, %v1716
        %v1729 = vpack.c.b16 %v1719, %v1718
        %v1730 = vpack.c.b16 %v1721, %v1720
        %v1731 = vpack.c.b16 %v1723, %v1722
        %1740 = vmatpush.bf16.msra.mxu0 %v1731
        %1741 = vmatpush.bf16.msra.mxu0 %v1730
        %1742 = vmatpush.bf16.msra.mxu0 %v1729
        %1743 = vmatpush.bf16.msra.mxu0 %v1728
        %1744 = vmatpush.bf16.msra.mxu0 %v1727
        %1745 = vmatpush.bf16.msra.mxu0 %v1726
        %1746 = vmatpush.bf16.msra.mxu0 %v1725
        %1747 = vmatpush.bf16.msra.mxu0 %v1724
        %1748 = vmatmul.bf16.gmra.mxu0 %v1671
        %v1749 = vpop.f32.mrf.mxu0
        %v1750 = vadd.f32 %v1690, %v1749
        %v1751 = vpop.f32.mrf.mxu0
        %v1752 = vadd.f32 %v1690, %v1751
        %1753 = vdwg.mxu0
        %v1754 = vmax.f32 %v1750, 0.0
        %v1755 = vmax.f32 %v1752, 0.0
        %v1756 = vpack.c.bf16 %v1755, %v1754
        %v1757 = vld [vmem:[%s12] sm:$0xf]
        %v1758 = vld [vmem:[%s12 + $0x4] sm:$0xf]
        %v1759 = vld [vmem:[%s12 + $0x8] sm:$0xf]
        %v1760 = vld [vmem:[%s12 + $0xc] sm:$0xf]
        %v1761 = vld [vmem:[%s12 + $0x10] sm:$0xf]
        %v1762 = vld [vmem:[%s12 + $0x14] sm:$0xf]
        %v1763 = vld [vmem:[%s12 + $0x18] sm:$0xf]
        %v1764 = vld [vmem:[%s12 + $0x1c] sm:$0xf]
        %v1765 = vld [vmem:[%s12 + $0x20] sm:$0xf]
        %v1766 = vld [vmem:[%s12 + $0x24] sm:$0xf]
        %v1767 = vld [vmem:[%s12 + $0x28] sm:$0xf]
        %v1768 = vld [vmem:[%s12 + $0x2c] sm:$0xf]
        %v1769 = vld [vmem:[%s12 + $0x30] sm:$0xf]
        %v1770 = vld [vmem:[%s12 + $0x34] sm:$0xf]
        %v1771 = vld [vmem:[%s12 + $0x38] sm:$0xf]
        %v1772 = vld [vmem:[%s12 + $0x3c] sm:$0xf]
        %v1773 = vld [vmem:[%s13] sm:$0x1]
        %v1775 = vperm.slane %v1773, 0
        %v1793 = vunpack.c.l.b16 %v1757
        %v1794 = vunpack.c.l.b16 %v1758
        %v1795 = vunpack.c.l.b16 %v1759
        %v1796 = vunpack.c.l.b16 %v1760
        %v1797 = vunpack.c.l.b16 %v1761
        %v1798 = vunpack.c.l.b16 %v1762
        %v1799 = vunpack.c.l.b16 %v1763
        %v1800 = vunpack.c.l.b16 %v1764
        %v1801 = vunpack.c.l.b16 %v1765
        %v1802 = vunpack.c.l.b16 %v1766
        %v1803 = vunpack.c.l.b16 %v1767
        %v1804 = vunpack.c.l.b16 %v1768
        %v1805 = vunpack.c.l.b16 %v1769
        %v1806 = vunpack.c.l.b16 %v1770
        %v1807 = vunpack.c.l.b16 %v1771
        %v1808 = vunpack.c.l.b16 %v1772
        %v1809 = vpack.c.b16 %v1794, %v1793
        %v1810 = vpack.c.b16 %v1796, %v1795
        %v1811 = vpack.c.b16 %v1798, %v1797
        %v1812 = vpack.c.b16 %v1800, %v1799
        %v1813 = vpack.c.b16 %v1802, %v1801
        %v1814 = vpack.c.b16 %v1804, %v1803
        %v1815 = vpack.c.b16 %v1806, %v1805
        %v1816 = vpack.c.b16 %v1808, %v1807
        %1825 = vmatpush.bf16.msra.mxu0 %v1816
        %1826 = vmatpush.bf16.msra.mxu0 %v1815
        %1827 = vmatpush.bf16.msra.mxu0 %v1814
        %1828 = vmatpush.bf16.msra.mxu0 %v1813
        %1829 = vmatpush.bf16.msra.mxu0 %v1812
        %1830 = vmatpush.bf16.msra.mxu0 %v1811
        %1831 = vmatpush.bf16.msra.mxu0 %v1810
        %1832 = vmatpush.bf16.msra.mxu0 %v1809
        %1833 = vmatmul.bf16.gmra.mxu0 %v1756
        %v1834 = vpop.f32.mrf.mxu0
        %v1835 = vadd.f32 %v1775, %v1834
        %v1836 = vpop.f32.mrf.mxu0
        %v1837 = vadd.f32 %v1775, %v1836
        %1838 = vdwg.mxu0
        %v1839 = vmax.f32 %v1835, 0.0
        %v1840 = vmax.f32 %v1837, 0.0
        %s1841 = sld [smem:[#allocation3 + %s39]]
        %s1842 = ssub.s32 %s1841, 14
        %s1843 = scvt.s32.f32 %s1842
        %v1844 = vlaneseq
        %v1845 = vshrl.u32 %v1844, 7
        %v1846 = vadd.s32 %v1845, 8
        %v1847 = vstv %s1842
        %vm1848 = vcmp.lt.s32.totalorder %v1845, %v1847
        %vm1849 = vcmp.lt.s32.totalorder %v1846, %v1847
        %v1850 = vsel %vm1848, 1, 0
        %v1851 = vsel %vm1849, 1, 0
        %v1852 = vcvt.s32.f32 %v1850
        %v1853 = vcvt.s32.f32 %v1851
        %v1854 = vmul.f32 %v1839, %v1852
        %v1855 = vmul.f32 %v1840, %v1853
        %vm1856 = vcmask 1041408
        %v1857 = vsel %vm1856, %v1855, 0.0
        %v1858 = vadd.f32 %v1854, %v1857
        %v1859 = vrot.slane %v1858, 4
        %v1860 = vadd.f32 %v1858, %v1859
        %v1861 = vrot.slane %v1860, 2
        %v1862 = vadd.f32 %v1860, %v1861
        %v1863 = vrot.slane %v1862, 1
        %v1864 = vadd.f32 %v1862, %v1863
        %v1865 = vmul.f32 %v1854, %v1839
        %v1866 = vmul.f32 %v1855, %v1840
        %v1867 = vsel %vm1856, %v1866, 0.0
        %v1868 = vadd.f32 %v1865, %v1867
        %v1869 = vrot.slane %v1868, 4
        %v1870 = vadd.f32 %v1868, %v1869
        %v1871 = vrot.slane %v1870, 2
        %v1872 = vadd.f32 %v1870, %v1871
        %v1873 = vrot.slane %v1872, 1
        %v1874 = vadd.f32 %v1872, %v1873
        %v1875 = vstv %s1843
        %v1876 = vrcp.pop %v1875
        %v1877 = vmul.f32 %v1875, %v1876
        %v1878 = vsub.f32 1.0, %v1877
        %v1879 = vmul.f32 %v1876, %v1878
        %v1880 = vadd.f32 %v1876, %v1879
        %vm1881 = vweird.f32 %v1875
        %vm1882 = vweird.f32 %v1876
        %vm1883 = vmor %vm1881, %vm1882
        %v1884 = vsel %vm1883, %v1876, %v1880
        %v1885 = vand.u32 2147483647, %v1875
        %vm1886 = vcmp.eq.f32.partialorder %v1885, 8.507059e+37
        %v1887 = vand.u32 %v1875, 2147483648
        %v1888 = vor.u32 1.1754944e-38, %v1887
        %v1889 = vsel %vm1886, %v1888, %v1884
        %v1890 = vmul.f32 %v1864, %v1889
        %v1891 = vmul.f32 %v1890, %v1864
        %v1892 = vsub.f32 %v1874, %v1891
        %s1893 = ssub.f32 %s1843, 1.0
        %s1894 = smax.f32 %s1893, 1.0
        %v1895 = vstv %s1894
        %v1896 = vrcp.pop %v1895
        %v1897 = vmul.f32 %v1895, %v1896
        %v1898 = vsub.f32 1.0, %v1897
        %v1899 = vmul.f32 %v1896, %v1898
        %v1900 = vadd.f32 %v1896, %v1899
        %vm1901 = vweird.f32 %v1895
        %vm1902 = vweird.f32 %v1896
        %vm1903 = vmor %vm1901, %vm1902
        %v1904 = vsel %vm1903, %v1896, %v1900
        %v1905 = vand.u32 2147483647, %v1895
        %vm1906 = vcmp.eq.f32.partialorder %v1905, 8.507059e+37
        %v1907 = vand.u32 %v1895, 2147483648
        %v1908 = vor.u32 1.1754944e-38, %v1907
        %v1909 = vsel %vm1906, %v1908, %v1904
        %v1910 = vmul.f32 %v1892, %v1909
        %v1911 = vmax.f32 %v1910, 0.0
        %v1912 = vrsqrt.pop %v1911
        %v1913 = vmul.f32 %v1912, %v1911
        %v1914 = vmul.f32 %v1913, %v1912
        %v1915 = vmul.f32 0.5, %v1914
        %v1916 = vsub.f32 1.5, %v1915
        %v1917 = vmul.f32 %v1912, %v1916
        %v1918 = vmul.f32 %v1911, %v1917
        %vm1919 = vcmp.eq.f32.partialorder %v1911, inf
        %v1920 = vsel %vm1919, %v1911, %v1918
        %vm1921 = vcmp.eq.f32.partialorder %v1911, 0.0
        %v1922 = vand.u32 %v1911, 2147483648
        %v1923 = vsel %vm1921, %v1922, %v1920
        %1924 = vst [vmem:[%s574] sm:$0x1] %v1890
        %1925 = vst [vmem:[%s577] sm:$0x1] %v1923
        %p1926 = scmp.lt.s32.totalorder %s39, 1
        %s1927 = scalar_select %p1926, %s39, 1
        %s1928 = scalar_lea.vmem %s14, %s1927
        %p1929 = scmp.lt.s32.totalorder %s39, 1
        %s1930 = scalar_select %p1929, %s39, 1
        %s1931 = scalar_lea.vmem %s15, %s1930
        // Predicated region
        $region97: #{superb_xvector_forward.2} parent=71 // pred_check
          %p1932 = pneg %p335
        $region98: #{superb_xvector_forward.2} parent=71 // pred_check_branch
          %1934 = sbr.rel (%p1932) target = $region100
        $region99: #{superb_xvector_forward.2} parent=71 // pred_region
          _
        $region100: #{superb_xvector_forward.2} parent=71 // pred_fallthru
          _
        // Predicated region
        $region101: #{superb_xvector_forward.2} parent=71 // pred_check
          %p1935 = pneg %p361
        $region102: #{superb_xvector_forward.2} parent=71 // pred_check_branch
          %1937 = sbr.rel (%p1935) target = $region104
        $region103: #{superb_xvector_forward.2} parent=71 // pred_region
          _
        $region104: #{superb_xvector_forward.2} parent=71 // pred_fallthru
          _
      $region72: #{superb_xvector_forward.2} parent=5 // pred_fallthru
        _
      %p1938 = scmp.le.s32.totalorder 2, %s34
      // Predicated region
      $region105: #{superb_xvector_forward.2} parent=5 // pred_check
        %p1939 = pneg %p1938
      $region106: #{superb_xvector_forward.2} parent=5 // pred_check_branch
        %1941 = sbr.rel (%p1939) target = $region108
      $region107: #{superb_xvector_forward.2} parent=5 // pred_region
        %s1942 = ssub.s32 %s34, 2
        // Predicated region
        $region109: #{superb_xvector_forward.2} parent=107 // pred_check
          %p1943 = pneg %p341
        $region110: #{superb_xvector_forward.2} parent=107 // pred_check_branch
          %1945 = sbr.rel (%p1943) target = $region112
        $region111: #{superb_xvector_forward.2} parent=107 // pred_region
          %p1946 = scmp.lt.s32.totalorder %s40, 1
          %s1947 = scalar_select %p1946, %s40, 1
          %s1948 = scalar_lea.vmem %s14, %s1947
        $region112: #{superb_xvector_forward.2} parent=107 // pred_fallthru
          _
        // Predicated region
        $region113: #{superb_xvector_forward.2} parent=107 // pred_check
          %p1949 = pneg %p367
        $region114: #{superb_xvector_forward.2} parent=107 // pred_check_branch
          %1951 = sbr.rel (%p1949) target = $region116
        $region115: #{superb_xvector_forward.2} parent=107 // pred_region
          %p1952 = scmp.lt.s32.totalorder %s40, 1
          %s1953 = scalar_select %p1952, %s40, 1
          %s1954 = scalar_lea.vmem %s15, %s1953
        $region116: #{superb_xvector_forward.2} parent=107 // pred_fallthru
          _
      $region108: #{superb_xvector_forward.2} parent=5 // pred_fallthru
        _
    $region6: #{superb_xvector_forward.2} parent=1 // loop_footer
      %s38 = sadd.s32 1, %s34
    $region7: #{superb_xvector_forward.2} parent=1 // loop_footer_branch
      %33 = sbr.rel target = $region3
    $region8: #{superb_xvector_forward.2} parent=1 // loop_exit
      _
    %1955 = vsyncpa [#allocation5], 1
    %s1956 = scalar_lea.sflag [#allocation5], 1
    %1957 = vsyncpa %s1956, 1
    %1958 = vsyncpa [#allocation7], 1
    %1959 = vsyncpa [#allocation10], 1
    %1960 = vsyncpa [#allocation13], 1

</llo_original>
